<compile_context>
chip_gen: v7x
topology: tpu7x:2x2x1
jax: 0.10.0
libtpu: 0.0.40
codegen_flags: <defaults>
</compile_context>

<pallas_src>
import functools

import jax
import jax.numpy as jnp
from jax.experimental import pallas as pl
from jax.experimental.pallas import tpu as pltpu


def _full_block_spec(shape):
    """Whole-array block with a constant index map (grid=(1,))."""
    ndim = len(shape)
    return pl.BlockSpec(shape, lambda i, _n=ndim: (0,) * _n)


# ------------------------------ Fused kernel ---------------------------------
def fused_model_kernel(num_layers, hidden_dim, in_dims, T, B, *refs):
    """refs = [tok, emb, slab_0..slab_{L-1}, fc_slab, out, seq_scratch]."""
    H = hidden_dim
    tok_ref = refs[0]                              # [T*B, 1] int32 (time-major)
    emb_ref = refs[1]                              # [V, E]
    slab_refs = refs[2:2 + num_layers]             # [D+H+1, 4H] each
    fc_ref = refs[2 + num_layers]                  # [H+1, V]
    out_ref = refs[3 + num_layers]                 # [T*B, V]
    seq_scr = refs[4 + num_layers]                 # VMEM scratch [T*B, H]

    TB = T * B
    V_emb = emb_ref.shape[0]

    # ---- Embedding lookup: one-hot gather on the MXU (vocab is tiny). ----
    # TODO(synk): out-of-range token ids map to a zero row here (PyTorch raises).
    tok = tok_ref[...]                                            # [TB, 1] int32
    lane_v = jax.lax.broadcasted_iota(jnp.int32, (TB, V_emb), 1)
    onehot = (lane_v == tok).astype(jnp.float32)                  # [TB, V]
    x = jnp.dot(onehot, emb_ref[...],
                preferred_element_type=jnp.float32)               # [TB, E]

    # Hoisted lane mask: lanes [2H, 3H) are the "g" gate (tanh), rest sigmoid.
    lane_g = jax.lax.broadcasted_iota(jnp.int32, (B, 4 * H), 1)
    g_gate_mask = (lane_g >= 2 * H) & (lane_g < 3 * H)

    for layer in range(num_layers):
        D = in_dims[layer]
        slab = slab_refs[layer]
        w_ih = slab[0:D, :]                  # [D, 4H]   (row offsets 8-aligned)
        w_hh = slab[D:D + H, :]              # [H, 4H]
        b = slab[D + H:D + H + 1, :]         # [1, 4H]   combined b_ih + b_hh

        # Hoisted input projection: one batched matmul over all timesteps,
        # off the serial recurrence critical path.
        gates_x = jnp.dot(x, w_ih,
                          preferred_element_type=jnp.float32) + b  # [TB, 4H]

        h = jnp.zeros((B, H), jnp.float32)
        c = jnp.zeros((B, H), jnp.float32)
        for t in range(T):                   # static T -> fully unrolled
            g = gates_x[t * B:(t + 1) * B, :] + jnp.dot(
                h, w_hh, preferred_element_type=jnp.float32)       # [B, 4H]
            # Full-vreg nonlinearities (EUP has slack) + lane-mask select,
            # then a single 4-way split for the state update.
            act = jnp.where(g_gate_mask, jnp.tanh(g), jax.nn.sigmoid(g))
            i_g = act[:, 0 * H:1 * H]
            f_g = act[:, 1 * H:2 * H]
            g_g = act[:, 2 * H:3 * H]
            o_g = act[:, 3 * H:4 * H]
            c = f_g * c + i_g * g_g
            h = o_g * jnp.tanh(c)
            # Contiguous leading-dim store; sequence stays VMEM-resident.
            seq_scr[pl.ds(t * B, B), :] = h

        x = seq_scr[...]                     # [TB, H] -> next layer / final FC
        # TODO(synk): training-mode inter-layer dropout not implemented
        # (identity in eval/inference, matching PyTorch .eval()).

    # Final Linear on the flat, time-major [TB, H] slab (no reshapes in kernel).
    fc_w = fc_ref[0:H, :]                    # [H, V]
    fc_b = fc_ref[H:H + 1, :]                # [1, V]
    out_ref[...] = jnp.dot(x, fc_w, preferred_element_type=jnp.float32) + fc_b


def fused_simple_model(tok_tm, emb, slabs, fc_slab, *, T, B, hidden_dim, in_dims):
    """tok_tm: [T*B, 1] int32 (time-major); emb: [V, E]; slabs: list of
    [D+H+1, 4H]; fc_slab: [H+1, V]. Returns flat logits [T*B, V]."""
    V = fc_slab.shape[1]
    num_layers = len(slabs)
    inputs = [tok_tm, emb, *slabs, fc_slab]
    in_specs = [_full_block_spec(a.shape) for a in inputs]

    kernel = functools.partial(fused_model_kernel, num_layers, hidden_dim,
                               tuple(in_dims), T, B)
    return pl.pallas_call(
        kernel,
        out_shape=jax.ShapeDtypeStruct((T * B, V), jnp.float32),
        grid_spec=pltpu.PrefetchScalarGridSpec(
            num_scalar_prefetch=0,
            grid=(1,),                       # everything resident; one invocation
            in_specs=in_specs,
            out_specs=_full_block_spec((T * B, V)),
            scratch_shapes=[pltpu.VMEM((T * B, hidden_dim), jnp.float32)],
        ),
        compiler_params=pltpu.CompilerParams(
            dimension_semantics=("arbitrary",),
        ),
    )(*inputs)


# ------------------------------- Full forward --------------------------------
@functools.partial(jax.jit, static_argnames=("hidden_dim", "in_dims"))
def simple_model_forward(tokens, packed, *, hidden_dim, in_dims):
    """tokens: [B, T] int32 -> logits [B, T, vocab_size] f32."""
    B, T = tokens.shape
    V = packed["fc"].shape[1]
    # Time-major flat tokens for the in-kernel gather; everything else is packed.
    tok_tm = tokens.T.reshape(T * B, 1).astype(jnp.int32)
    out_flat = fused_simple_model(tok_tm, packed["emb"], packed["slabs"],
                                  packed["fc"], T=T, B=B,
                                  hidden_dim=hidden_dim, in_dims=in_dims)
    # Cheap wrapper-side relayout of a tiny tensor back to [B, T, V].
    return out_flat.reshape(T, B, V).transpose(1, 0, 2)


def pack_params(params):
    """Concatenate per-layer (W_ih^T, W_hh^T, b) row-wise and (fc_W^T, fc_b)."""
    return {
        "emb": params["embedding"],
        "slabs": [jnp.concatenate([lp["w_ih_t"], lp["w_hh_t"], lp["b"]], axis=0)
                  for lp in params["lstm"]],
        "fc": jnp.concatenate([params["fc_w_t"], params["fc_b"]], axis=0),
    }


# -------------------------- Pure-JAX reference (check) ------------------------
def reference_forward(tokens, params, num_layers):
    x = jnp.take(params["embedding"], tokens, axis=0)  # [B, T, E]
    B, T, _ = x.shape
    for layer in range(num_layers):
        lp = params["lstm"][layer]
        H = lp["w_hh_t"].shape[0]
        h = jnp.zeros((B, H), jnp.float32)
        c = jnp.zeros((B, H), jnp.float32)
        outs = []
        for t in range(T):
            g = x[:, t, :] @ lp["w_ih_t"] + h @ lp["w_hh_t"] + lp["b"]
            i = jax.nn.sigmoid(g[:, 0 * H:1 * H])
            f = jax.nn.sigmoid(g[:, 1 * H:2 * H])
            gg = jnp.tanh(g[:, 2 * H:3 * H])
            o = jax.nn.sigmoid(g[:, 3 * H:4 * H])
            c = f * c + i * gg
            h = o * jnp.tanh(c)
            outs.append(h)
        x = jnp.stack(outs, axis=1)  # [B, T, H]
    return x @ params["fc_w_t"] + params["fc_b"]


# ----------------------------------- Main -------------------------------------
if __name__ == "__main__":
    vocab_size, embedding_dim, hidden_dim, num_layers = 32, 16, 32, 2
    B, T = 2, 8

    key = jax.random.PRNGKey(0)
    keys = jax.random.split(key, 3 + 4 * num_layers)

    params = {
        "embedding": 0.1 * jax.random.normal(
            keys[0], (vocab_size, embedding_dim), jnp.float32),
        # Linear stored pre-transposed: [H, V]; bias as [1, V].
        "fc_w_t": 0.1 * jax.random.normal(
            keys[1], (hidden_dim, vocab_size), jnp.float32),
        "fc_b": 0.1 * jax.random.normal(keys[2], (1, vocab_size), jnp.float32),
        "lstm": [],
    }
    for layer in range(num_layers):
        in_dim = embedding_dim if layer == 0 else hidden_dim
        k0, k1, k2, k3 = keys[3 + 4 * layer: 3 + 4 * (layer + 1)]
        # PyTorch stores W_ih [4H, in], W_hh [4H, H]; we keep transposed copies.
        w_ih_t = 0.1 * jax.random.normal(k0, (in_dim, 4 * hidden_dim), jnp.float32)
        w_hh_t = 0.1 * jax.random.normal(k1, (hidden_dim, 4 * hidden_dim), jnp.float32)
        b_ih = 0.1 * jax.random.normal(k2, (4 * hidden_dim,), jnp.float32)
        b_hh = 0.1 * jax.random.normal(k3, (4 * hidden_dim,), jnp.float32)
        params["lstm"].append({
            "w_ih_t": w_ih_t,
            "w_hh_t": w_hh_t,
            "b": (b_ih + b_hh).reshape(1, 4 * hidden_dim),
        })

    packed = pack_params(params)
    in_dims = tuple(embedding_dim if l == 0 else hidden_dim
                    for l in range(num_layers))

    tokens = jax.random.randint(jax.random.PRNGKey(42), (B, T), 0, vocab_size,
                                dtype=jnp.int32)

    logits = simple_model_forward(tokens, packed,
                                  hidden_dim=hidden_dim, in_dims=in_dims)
    logits = jax.block_until_ready(logits)
    assert logits.shape == (B, T, vocab_size), logits.shape

    ref = reference_forward(tokens, params, num_layers)
    assert jnp.allclose(logits, ref, rtol=1e-4, atol=1e-4), (
        float(jnp.max(jnp.abs(logits - ref))))

    print("KERNEL_OK")
</pallas_src>

<mosaic_0001>
module attributes {stable_mosaic.version = 11 : i64} {
  func.func @fused_model_kernel(%arg0: i32, %arg1: memref<16x1xi32, #tpu.memory_space<vmem>>, %arg2: memref<32x16xf32, #tpu.memory_space<vmem>>, %arg3: memref<49x128xf32, #tpu.memory_space<vmem>>, %arg4: memref<65x128xf32, #tpu.memory_space<vmem>>, %arg5: memref<33x32xf32, #tpu.memory_space<vmem>>, %arg6: memref<16x32xf32, #tpu.memory_space<vmem>>, %arg7: memref<16x32xf32, #tpu.memory_space<vmem>>) attributes {dimension_semantics = [#tpu.dimension_semantics<arbitrary>], iteration_bounds = array<i64: 1>, scalar_prefetch = 0 : i64, scratch_operands = 1 : i64, tpu.core_type = #tpu.core_type<tc>, window_params = [{pipeline_mode = #tpu.pipeline_mode<synchronous>, transform_indices = @transform_0, window_bounds = array<i64: 16, 1>}, {pipeline_mode = #tpu.pipeline_mode<synchronous>, transform_indices = @transform_1, window_bounds = array<i64: 32, 16>}, {pipeline_mode = #tpu.pipeline_mode<synchronous>, transform_indices = @transform_2, window_bounds = array<i64: 49, 128>}, {pipeline_mode = #tpu.pipeline_mode<synchronous>, transform_indices = @transform_3, window_bounds = array<i64: 65, 128>}, {pipeline_mode = #tpu.pipeline_mode<synchronous>, transform_indices = @transform_4, window_bounds = array<i64: 33, 32>}, {pipeline_mode = #tpu.pipeline_mode<synchronous>, transform_indices = @transform_5, window_bounds = array<i64: 16, 32>}]} {
    %c0 = arith.constant 0 : index
    %c0_0 = arith.constant 0 : index
    %0 = vector.load %arg1[%c0, %c0_0] : memref<16x1xi32, #tpu.memory_space<vmem>>, vector<16x1xi32>
    %1 = tpu.iota {dimensions = array<i32: 1>} : vector<16x32xi32>
    %2 = vector.broadcast %0 : vector<16x1xi32> to vector<16x32xi32>
    %3 = arith.cmpi eq, %1, %2 : vector<16x32xi32>
    %4 = arith.extui %3 : vector<16x32xi1> to vector<16x32xi32>
    %5 = arith.sitofp %4 : vector<16x32xi32> to vector<16x32xf32>
    %c0_1 = arith.constant 0 : index
    %c0_2 = arith.constant 0 : index
    %6 = vector.load %arg2[%c0_1, %c0_2] : memref<32x16xf32, #tpu.memory_space<vmem>>, vector<32x16xf32>
    %cst = arith.constant dense<0.000000e+00> : vector<16x16xf32>
    %7 = tpu.matmul %5, %6, %cst {dimension_numbers = #tpu.dot_dimension_numbers<[1], [0], [0], [1], [0, 0, 1, 1], [], []>} : vector<16x32xf32>, vector<32x16xf32>, vector<16x16xf32> -> vector<16x16xf32>
    %8 = tpu.iota {dimensions = array<i32: 1>} : vector<2x128xi32>
    %c64_i32 = arith.constant 64 : i32
    %9 = vector.broadcast %c64_i32 : i32 to vector<2x128xi32>
    %10 = arith.cmpi sge, %8, %9 : vector<2x128xi32>
    %c96_i32 = arith.constant 96 : i32
    %11 = vector.broadcast %c96_i32 : i32 to vector<2x128xi32>
    %12 = arith.cmpi slt, %8, %11 : vector<2x128xi32>
    %13 = arith.andi %10, %12 : vector<2x128xi1>
    %c0_3 = arith.constant 0 : index
    %c0_4 = arith.constant 0 : index
    %14 = vector.load %arg3[%c0_3, %c0_4] : memref<49x128xf32, #tpu.memory_space<vmem>>, vector<16x128xf32>
    %c16 = arith.constant 16 : index
    %c0_5 = arith.constant 0 : index
    %15 = vector.load %arg3[%c16, %c0_5] : memref<49x128xf32, #tpu.memory_space<vmem>>, vector<32x128xf32>
    %c48 = arith.constant 48 : index
    %c0_6 = arith.constant 0 : index
    %16 = vector.load %arg3[%c48, %c0_6] : memref<49x128xf32, #tpu.memory_space<vmem>>, vector<1x128xf32>
    %cst_7 = arith.constant dense<0.000000e+00> : vector<16x128xf32>
    %17 = tpu.matmul %7, %14, %cst_7 {dimension_numbers = #tpu.dot_dimension_numbers<[1], [0], [0], [1], [0, 0, 1, 1], [], []>} : vector<16x16xf32>, vector<16x128xf32>, vector<16x128xf32> -> vector<16x128xf32>
    %18 = vector.broadcast %16 : vector<1x128xf32> to vector<16x128xf32>
    %19 = arith.addf %17, %18 : vector<16x128xf32>
    %cst_8 = arith.constant 0.000000e+00 : f32
    %20 = vector.broadcast %cst_8 : f32 to vector<2x32xf32>
    %cst_9 = arith.constant 0.000000e+00 : f32
    %21 = vector.broadcast %cst_9 : f32 to vector<2x32xf32>
    %22 = vector.extract_strided_slice %19 {offsets = [0, 0], sizes = [2, 128], strides = [1, 1]} : vector<16x128xf32> to vector<2x128xf32>
    %cst_10 = arith.constant dense<0.000000e+00> : vector<2x128xf32>
    %23 = tpu.matmul %20, %15, %cst_10 {dimension_numbers = #tpu.dot_dimension_numbers<[1], [0], [0], [1], [0, 0, 1, 1], [], []>} : vector<2x32xf32>, vector<32x128xf32>, vector<2x128xf32> -> vector<2x128xf32>
    %24 = arith.addf %22, %23 : vector<2x128xf32>
    %25 = math.tanh %24 : vector<2x128xf32>
    %26 = arith.negf %24 : vector<2x128xf32>
    %27 = math.exp %26 : vector<2x128xf32>
    %cst_11 = arith.constant 1.000000e+00 : f32
    %28 = vector.broadcast %cst_11 : f32 to vector<2x128xf32>
    %29 = arith.addf %28, %27 : vector<2x128xf32>
    %30 = arith.divf %28, %29 : vector<2x128xf32>
    %31 = arith.select %13, %25, %30 : vector<2x128xi1>, vector<2x128xf32>
    %32 = vector.extract_strided_slice %31 {offsets = [0, 0], sizes = [2, 32], strides = [1, 1]} : vector<2x128xf32> to vector<2x32xf32>
    %33 = vector.extract_strided_slice %31 {offsets = [0, 32], sizes = [2, 32], strides = [1, 1]} : vector<2x128xf32> to vector<2x32xf32>
    %34 = vector.extract_strided_slice %31 {offsets = [0, 64], sizes = [2, 32], strides = [1, 1]} : vector<2x128xf32> to vector<2x32xf32>
    %35 = vector.extract_strided_slice %31 {offsets = [0, 96], sizes = [2, 32], strides = [1, 1]} : vector<2x128xf32> to vector<2x32xf32>
    %36 = arith.mulf %33, %21 : vector<2x32xf32>
    %37 = arith.mulf %32, %34 : vector<2x32xf32>
    %38 = arith.addf %36, %37 : vector<2x32xf32>
    %39 = math.tanh %38 : vector<2x32xf32>
    %40 = arith.mulf %35, %39 : vector<2x32xf32>
    %c0_12 = arith.constant 0 : index
    %c0_13 = arith.constant 0 : index
    %41 = vector.load %arg7[%c0_12, %c0_13] : memref<16x32xf32, #tpu.memory_space<vmem>>, vector<2x32xf32>
    tpu.vector_store %arg7[%c0_12, %c0_13], %40 {strides = array<i32>} : memref<16x32xf32, #tpu.memory_space<vmem>>, vector<2x32xf32>,
    %42 = vector.extract_strided_slice %19 {offsets = [2, 0], sizes = [2, 128], strides = [1, 1]} : vector<16x128xf32> to vector<2x128xf32>
    %cst_14 = arith.constant dense<0.000000e+00> : vector<2x128xf32>
    %43 = tpu.matmul %40, %15, %cst_14 {dimension_numbers = #tpu.dot_dimension_numbers<[1], [0], [0], [1], [0, 0, 1, 1], [], []>} : vector<2x32xf32>, vector<32x128xf32>, vector<2x128xf32> -> vector<2x128xf32>
    %44 = arith.addf %42, %43 : vector<2x128xf32>
    %45 = math.tanh %44 : vector<2x128xf32>
    %46 = arith.negf %44 : vector<2x128xf32>
    %47 = math.exp %46 : vector<2x128xf32>
    %cst_15 = arith.constant 1.000000e+00 : f32
    %48 = vector.broadcast %cst_15 : f32 to vector<2x128xf32>
    %49 = arith.addf %48, %47 : vector<2x128xf32>
    %50 = arith.divf %48, %49 : vector<2x128xf32>
    %51 = arith.select %13, %45, %50 : vector<2x128xi1>, vector<2x128xf32>
    %52 = vector.extract_strided_slice %51 {offsets = [0, 0], sizes = [2, 32], strides = [1, 1]} : vector<2x128xf32> to vector<2x32xf32>
    %53 = vector.extract_strided_slice %51 {offsets = [0, 32], sizes = [2, 32], strides = [1, 1]} : vector<2x128xf32> to vector<2x32xf32>
    %54 = vector.extract_strided_slice %51 {offsets = [0, 64], sizes = [2, 32], strides = [1, 1]} : vector<2x128xf32> to vector<2x32xf32>
    %55 = vector.extract_strided_slice %51 {offsets = [0, 96], sizes = [2, 32], strides = [1, 1]} : vector<2x128xf32> to vector<2x32xf32>
    %56 = arith.mulf %53, %38 : vector<2x32xf32>
    %57 = arith.mulf %52, %54 : vector<2x32xf32>
    %58 = arith.addf %56, %57 : vector<2x32xf32>
    %59 = math.tanh %58 : vector<2x32xf32>
    %60 = arith.mulf %55, %59 : vector<2x32xf32>
    %c2 = arith.constant 2 : index
    %c0_16 = arith.constant 0 : index
    %61 = vector.load %arg7[%c2, %c0_16] : memref<16x32xf32, #tpu.memory_space<vmem>>, vector<2x32xf32>
    tpu.vector_store %arg7[%c2, %c0_16], %60 {strides = array<i32>} : memref<16x32xf32, #tpu.memory_space<vmem>>, vector<2x32xf32>,
    %62 = vector.extract_strided_slice %19 {offsets = [4, 0], sizes = [2, 128], strides = [1, 1]} : vector<16x128xf32> to vector<2x128xf32>
    %cst_17 = arith.constant dense<0.000000e+00> : vector<2x128xf32>
    %63 = tpu.matmul %60, %15, %cst_17 {dimension_numbers = #tpu.dot_dimension_numbers<[1], [0], [0], [1], [0, 0, 1, 1], [], []>} : vector<2x32xf32>, vector<32x128xf32>, vector<2x128xf32> -> vector<2x128xf32>
    %64 = arith.addf %62, %63 : vector<2x128xf32>
    %65 = math.tanh %64 : vector<2x128xf32>
    %66 = arith.negf %64 : vector<2x128xf32>
    %67 = math.exp %66 : vector<2x128xf32>
    %cst_18 = arith.constant 1.000000e+00 : f32
    %68 = vector.broadcast %cst_18 : f32 to vector<2x128xf32>
    %69 = arith.addf %68, %67 : vector<2x128xf32>
    %70 = arith.divf %68, %69 : vector<2x128xf32>
    %71 = arith.select %13, %65, %70 : vector<2x128xi1>, vector<2x128xf32>
    %72 = vector.extract_strided_slice %71 {offsets = [0, 0], sizes = [2, 32], strides = [1, 1]} : vector<2x128xf32> to vector<2x32xf32>
    %73 = vector.extract_strided_slice %71 {offsets = [0, 32], sizes = [2, 32], strides = [1, 1]} : vector<2x128xf32> to vector<2x32xf32>
    %74 = vector.extract_strided_slice %71 {offsets = [0, 64], sizes = [2, 32], strides = [1, 1]} : vector<2x128xf32> to vector<2x32xf32>
    %75 = vector.extract_strided_slice %71 {offsets = [0, 96], sizes = [2, 32], strides = [1, 1]} : vector<2x128xf32> to vector<2x32xf32>
    %76 = arith.mulf %73, %58 : vector<2x32xf32>
    %77 = arith.mulf %72, %74 : vector<2x32xf32>
    %78 = arith.addf %76, %77 : vector<2x32xf32>
    %79 = math.tanh %78 : vector<2x32xf32>
    %80 = arith.mulf %75, %79 : vector<2x32xf32>
    %c4 = arith.constant 4 : index
    %c0_19 = arith.constant 0 : index
    %81 = vector.load %arg7[%c4, %c0_19] : memref<16x32xf32, #tpu.memory_space<vmem>>, vector<2x32xf32>
    tpu.vector_store %arg7[%c4, %c0_19], %80 {strides = array<i32>} : memref<16x32xf32, #tpu.memory_space<vmem>>, vector<2x32xf32>,
    %82 = vector.extract_strided_slice %19 {offsets = [6, 0], sizes = [2, 128], strides = [1, 1]} : vector<16x128xf32> to vector<2x128xf32>
    %cst_20 = arith.constant dense<0.000000e+00> : vector<2x128xf32>
    %83 = tpu.matmul %80, %15, %cst_20 {dimension_numbers = #tpu.dot_dimension_numbers<[1], [0], [0], [1], [0, 0, 1, 1], [], []>} : vector<2x32xf32>, vector<32x128xf32>, vector<2x128xf32> -> vector<2x128xf32>
    %84 = arith.addf %82, %83 : vector<2x128xf32>
    %85 = math.tanh %84 : vector<2x128xf32>
    %86 = arith.negf %84 : vector<2x128xf32>
    %87 = math.exp %86 : vector<2x128xf32>
    %cst_21 = arith.constant 1.000000e+00 : f32
    %88 = vector.broadcast %cst_21 : f32 to vector<2x128xf32>
    %89 = arith.addf %88, %87 : vector<2x128xf32>
    %90 = arith.divf %88, %89 : vector<2x128xf32>
    %91 = arith.select %13, %85, %90 : vector<2x128xi1>, vector<2x128xf32>
    %92 = vector.extract_strided_slice %91 {offsets = [0, 0], sizes = [2, 32], strides = [1, 1]} : vector<2x128xf32> to vector<2x32xf32>
    %93 = vector.extract_strided_slice %91 {offsets = [0, 32], sizes = [2, 32], strides = [1, 1]} : vector<2x128xf32> to vector<2x32xf32>
    %94 = vector.extract_strided_slice %91 {offsets = [0, 64], sizes = [2, 32], strides = [1, 1]} : vector<2x128xf32> to vector<2x32xf32>
    %95 = vector.extract_strided_slice %91 {offsets = [0, 96], sizes = [2, 32], strides = [1, 1]} : vector<2x128xf32> to vector<2x32xf32>
    %96 = arith.mulf %93, %78 : vector<2x32xf32>
    %97 = arith.mulf %92, %94 : vector<2x32xf32>
    %98 = arith.addf %96, %97 : vector<2x32xf32>
    %99 = math.tanh %98 : vector<2x32xf32>
    %100 = arith.mulf %95, %99 : vector<2x32xf32>
    %c6 = arith.constant 6 : index
    %c0_22 = arith.constant 0 : index
    %101 = vector.load %arg7[%c6, %c0_22] : memref<16x32xf32, #tpu.memory_space<vmem>>, vector<2x32xf32>
    tpu.vector_store %arg7[%c6, %c0_22], %100 {strides = array<i32>} : memref<16x32xf32, #tpu.memory_space<vmem>>, vector<2x32xf32>,
    %102 = vector.extract_strided_slice %19 {offsets = [8, 0], sizes = [2, 128], strides = [1, 1]} : vector<16x128xf32> to vector<2x128xf32>
    %cst_23 = arith.constant dense<0.000000e+00> : vector<2x128xf32>
    %103 = tpu.matmul %100, %15, %cst_23 {dimension_numbers = #tpu.dot_dimension_numbers<[1], [0], [0], [1], [0, 0, 1, 1], [], []>} : vector<2x32xf32>, vector<32x128xf32>, vector<2x128xf32> -> vector<2x128xf32>
    %104 = arith.addf %102, %103 : vector<2x128xf32>
    %105 = math.tanh %104 : vector<2x128xf32>
    %106 = arith.negf %104 : vector<2x128xf32>
    %107 = math.exp %106 : vector<2x128xf32>
    %cst_24 = arith.constant 1.000000e+00 : f32
    %108 = vector.broadcast %cst_24 : f32 to vector<2x128xf32>
    %109 = arith.addf %108, %107 : vector<2x128xf32>
    %110 = arith.divf %108, %109 : vector<2x128xf32>
    %111 = arith.select %13, %105, %110 : vector<2x128xi1>, vector<2x128xf32>
    %112 = vector.extract_strided_slice %111 {offsets = [0, 0], sizes = [2, 32], strides = [1, 1]} : vector<2x128xf32> to vector<2x32xf32>
    %113 = vector.extract_strided_slice %111 {offsets = [0, 32], sizes = [2, 32], strides = [1, 1]} : vector<2x128xf32> to vector<2x32xf32>
    %114 = vector.extract_strided_slice %111 {offsets = [0, 64], sizes = [2, 32], strides = [1, 1]} : vector<2x128xf32> to vector<2x32xf32>
    %115 = vector.extract_strided_slice %111 {offsets = [0, 96], sizes = [2, 32], strides = [1, 1]} : vector<2x128xf32> to vector<2x32xf32>
    %116 = arith.mulf %113, %98 : vector<2x32xf32>
    %117 = arith.mulf %112, %114 : vector<2x32xf32>
    %118 = arith.addf %116, %117 : vector<2x32xf32>
    %119 = math.tanh %118 : vector<2x32xf32>
    %120 = arith.mulf %115, %119 : vector<2x32xf32>
    %c8 = arith.constant 8 : index
    %c0_25 = arith.constant 0 : index
    %121 = vector.load %arg7[%c8, %c0_25] : memref<16x32xf32, #tpu.memory_space<vmem>>, vector<2x32xf32>
    tpu.vector_store %arg7[%c8, %c0_25], %120 {strides = array<i32>} : memref<16x32xf32, #tpu.memory_space<vmem>>, vector<2x32xf32>,
    %122 = vector.extract_strided_slice %19 {offsets = [10, 0], sizes = [2, 128], strides = [1, 1]} : vector<16x128xf32> to vector<2x128xf32>
    %cst_26 = arith.constant dense<0.000000e+00> : vector<2x128xf32>
    %123 = tpu.matmul %120, %15, %cst_26 {dimension_numbers = #tpu.dot_dimension_numbers<[1], [0], [0], [1], [0, 0, 1, 1], [], []>} : vector<2x32xf32>, vector<32x128xf32>, vector<2x128xf32> -> vector<2x128xf32>
    %124 = arith.addf %122, %123 : vector<2x128xf32>
    %125 = math.tanh %124 : vector<2x128xf32>
    %126 = arith.negf %124 : vector<2x128xf32>
    %127 = math.exp %126 : vector<2x128xf32>
    %cst_27 = arith.constant 1.000000e+00 : f32
    %128 = vector.broadcast %cst_27 : f32 to vector<2x128xf32>
    %129 = arith.addf %128, %127 : vector<2x128xf32>
    %130 = arith.divf %128, %129 : vector<2x128xf32>
    %131 = arith.select %13, %125, %130 : vector<2x128xi1>, vector<2x128xf32>
    %132 = vector.extract_strided_slice %131 {offsets = [0, 0], sizes = [2, 32], strides = [1, 1]} : vector<2x128xf32> to vector<2x32xf32>
    %133 = vector.extract_strided_slice %131 {offsets = [0, 32], sizes = [2, 32], strides = [1, 1]} : vector<2x128xf32> to vector<2x32xf32>
    %134 = vector.extract_strided_slice %131 {offsets = [0, 64], sizes = [2, 32], strides = [1, 1]} : vector<2x128xf32> to vector<2x32xf32>
    %135 = vector.extract_strided_slice %131 {offsets = [0, 96], sizes = [2, 32], strides = [1, 1]} : vector<2x128xf32> to vector<2x32xf32>
    %136 = arith.mulf %133, %118 : vector<2x32xf32>
    %137 = arith.mulf %132, %134 : vector<2x32xf32>
    %138 = arith.addf %136, %137 : vector<2x32xf32>
    %139 = math.tanh %138 : vector<2x32xf32>
    %140 = arith.mulf %135, %139 : vector<2x32xf32>
    %c10 = arith.constant 10 : index
    %c0_28 = arith.constant 0 : index
    %141 = vector.load %arg7[%c10, %c0_28] : memref<16x32xf32, #tpu.memory_space<vmem>>, vector<2x32xf32>
    tpu.vector_store %arg7[%c10, %c0_28], %140 {strides = array<i32>} : memref<16x32xf32, #tpu.memory_space<vmem>>, vector<2x32xf32>,
    %142 = vector.extract_strided_slice %19 {offsets = [12, 0], sizes = [2, 128], strides = [1, 1]} : vector<16x128xf32> to vector<2x128xf32>
    %cst_29 = arith.constant dense<0.000000e+00> : vector<2x128xf32>
    %143 = tpu.matmul %140, %15, %cst_29 {dimension_numbers = #tpu.dot_dimension_numbers<[1], [0], [0], [1], [0, 0, 1, 1], [], []>} : vector<2x32xf32>, vector<32x128xf32>, vector<2x128xf32> -> vector<2x128xf32>
    %144 = arith.addf %142, %143 : vector<2x128xf32>
    %145 = math.tanh %144 : vector<2x128xf32>
    %146 = arith.negf %144 : vector<2x128xf32>
    %147 = math.exp %146 : vector<2x128xf32>
    %cst_30 = arith.constant 1.000000e+00 : f32
    %148 = vector.broadcast %cst_30 : f32 to vector<2x128xf32>
    %149 = arith.addf %148, %147 : vector<2x128xf32>
    %150 = arith.divf %148, %149 : vector<2x128xf32>
    %151 = arith.select %13, %145, %150 : vector<2x128xi1>, vector<2x128xf32>
    %152 = vector.extract_strided_slice %151 {offsets = [0, 0], sizes = [2, 32], strides = [1, 1]} : vector<2x128xf32> to vector<2x32xf32>
    %153 = vector.extract_strided_slice %151 {offsets = [0, 32], sizes = [2, 32], strides = [1, 1]} : vector<2x128xf32> to vector<2x32xf32>
    %154 = vector.extract_strided_slice %151 {offsets = [0, 64], sizes = [2, 32], strides = [1, 1]} : vector<2x128xf32> to vector<2x32xf32>
    %155 = vector.extract_strided_slice %151 {offsets = [0, 96], sizes = [2, 32], strides = [1, 1]} : vector<2x128xf32> to vector<2x32xf32>
    %156 = arith.mulf %153, %138 : vector<2x32xf32>
    %157 = arith.mulf %152, %154 : vector<2x32xf32>
    %158 = arith.addf %156, %157 : vector<2x32xf32>
    %159 = math.tanh %158 : vector<2x32xf32>
    %160 = arith.mulf %155, %159 : vector<2x32xf32>
    %c12 = arith.constant 12 : index
    %c0_31 = arith.constant 0 : index
    %161 = vector.load %arg7[%c12, %c0_31] : memref<16x32xf32, #tpu.memory_space<vmem>>, vector<2x32xf32>
    tpu.vector_store %arg7[%c12, %c0_31], %160 {strides = array<i32>} : memref<16x32xf32, #tpu.memory_space<vmem>>, vector<2x32xf32>,
    %162 = vector.extract_strided_slice %19 {offsets = [14, 0], sizes = [2, 128], strides = [1, 1]} : vector<16x128xf32> to vector<2x128xf32>
    %cst_32 = arith.constant dense<0.000000e+00> : vector<2x128xf32>
    %163 = tpu.matmul %160, %15, %cst_32 {dimension_numbers = #tpu.dot_dimension_numbers<[1], [0], [0], [1], [0, 0, 1, 1], [], []>} : vector<2x32xf32>, vector<32x128xf32>, vector<2x128xf32> -> vector<2x128xf32>
    %164 = arith.addf %162, %163 : vector<2x128xf32>
    %165 = math.tanh %164 : vector<2x128xf32>
    %166 = arith.negf %164 : vector<2x128xf32>
    %167 = math.exp %166 : vector<2x128xf32>
    %cst_33 = arith.constant 1.000000e+00 : f32
    %168 = vector.broadcast %cst_33 : f32 to vector<2x128xf32>
    %169 = arith.addf %168, %167 : vector<2x128xf32>
    %170 = arith.divf %168, %169 : vector<2x128xf32>
    %171 = arith.select %13, %165, %170 : vector<2x128xi1>, vector<2x128xf32>
    %172 = vector.extract_strided_slice %171 {offsets = [0, 0], sizes = [2, 32], strides = [1, 1]} : vector<2x128xf32> to vector<2x32xf32>
    %173 = vector.extract_strided_slice %171 {offsets = [0, 32], sizes = [2, 32], strides = [1, 1]} : vector<2x128xf32> to vector<2x32xf32>
    %174 = vector.extract_strided_slice %171 {offsets = [0, 64], sizes = [2, 32], strides = [1, 1]} : vector<2x128xf32> to vector<2x32xf32>
    %175 = vector.extract_strided_slice %171 {offsets = [0, 96], sizes = [2, 32], strides = [1, 1]} : vector<2x128xf32> to vector<2x32xf32>
    %176 = arith.mulf %173, %158 : vector<2x32xf32>
    %177 = arith.mulf %172, %174 : vector<2x32xf32>
    %178 = arith.addf %176, %177 : vector<2x32xf32>
    %179 = math.tanh %178 : vector<2x32xf32>
    %180 = arith.mulf %175, %179 : vector<2x32xf32>
    %c14 = arith.constant 14 : index
    %c0_34 = arith.constant 0 : index
    %181 = vector.load %arg7[%c14, %c0_34] : memref<16x32xf32, #tpu.memory_space<vmem>>, vector<2x32xf32>
    tpu.vector_store %arg7[%c14, %c0_34], %180 {strides = array<i32>} : memref<16x32xf32, #tpu.memory_space<vmem>>, vector<2x32xf32>,
    %c0_35 = arith.constant 0 : index
    %c0_36 = arith.constant 0 : index
    %182 = vector.load %arg7[%c0_35, %c0_36] : memref<16x32xf32, #tpu.memory_space<vmem>>, vector<16x32xf32>
    %c0_37 = arith.constant 0 : index
    %c0_38 = arith.constant 0 : index
    %183 = vector.load %arg4[%c0_37, %c0_38] : memref<65x128xf32, #tpu.memory_space<vmem>>, vector<32x128xf32>
    %c32 = arith.constant 32 : index
    %c0_39 = arith.constant 0 : index
    %184 = vector.load %arg4[%c32, %c0_39] : memref<65x128xf32, #tpu.memory_space<vmem>>, vector<32x128xf32>
    %c64 = arith.constant 64 : index
    %c0_40 = arith.constant 0 : index
    %185 = vector.load %arg4[%c64, %c0_40] : memref<65x128xf32, #tpu.memory_space<vmem>>, vector<1x128xf32>
    %cst_41 = arith.constant dense<0.000000e+00> : vector<16x128xf32>
    %186 = tpu.matmul %182, %183, %cst_41 {dimension_numbers = #tpu.dot_dimension_numbers<[1], [0], [0], [1], [0, 0, 1, 1], [], []>} : vector<16x32xf32>, vector<32x128xf32>, vector<16x128xf32> -> vector<16x128xf32>
    %187 = vector.broadcast %185 : vector<1x128xf32> to vector<16x128xf32>
    %188 = arith.addf %186, %187 : vector<16x128xf32>
    %cst_42 = arith.constant 0.000000e+00 : f32
    %189 = vector.broadcast %cst_42 : f32 to vector<2x32xf32>
    %cst_43 = arith.constant 0.000000e+00 : f32
    %190 = vector.broadcast %cst_43 : f32 to vector<2x32xf32>
    %191 = vector.extract_strided_slice %188 {offsets = [0, 0], sizes = [2, 128], strides = [1, 1]} : vector<16x128xf32> to vector<2x128xf32>
    %cst_44 = arith.constant dense<0.000000e+00> : vector<2x128xf32>
    %192 = tpu.matmul %189, %184, %cst_44 {dimension_numbers = #tpu.dot_dimension_numbers<[1], [0], [0], [1], [0, 0, 1, 1], [], []>} : vector<2x32xf32>, vector<32x128xf32>, vector<2x128xf32> -> vector<2x128xf32>
    %193 = arith.addf %191, %192 : vector<2x128xf32>
    %194 = math.tanh %193 : vector<2x128xf32>
    %195 = arith.negf %193 : vector<2x128xf32>
    %196 = math.exp %195 : vector<2x128xf32>
    %cst_45 = arith.constant 1.000000e+00 : f32
    %197 = vector.broadcast %cst_45 : f32 to vector<2x128xf32>
    %198 = arith.addf %197, %196 : vector<2x128xf32>
    %199 = arith.divf %197, %198 : vector<2x128xf32>
    %200 = arith.select %13, %194, %199 : vector<2x128xi1>, vector<2x128xf32>
    %201 = vector.extract_strided_slice %200 {offsets = [0, 0], sizes = [2, 32], strides = [1, 1]} : vector<2x128xf32> to vector<2x32xf32>
    %202 = vector.extract_strided_slice %200 {offsets = [0, 32], sizes = [2, 32], strides = [1, 1]} : vector<2x128xf32> to vector<2x32xf32>
    %203 = vector.extract_strided_slice %200 {offsets = [0, 64], sizes = [2, 32], strides = [1, 1]} : vector<2x128xf32> to vector<2x32xf32>
    %204 = vector.extract_strided_slice %200 {offsets = [0, 96], sizes = [2, 32], strides = [1, 1]} : vector<2x128xf32> to vector<2x32xf32>
    %205 = arith.mulf %202, %190 : vector<2x32xf32>
    %206 = arith.mulf %201, %203 : vector<2x32xf32>
    %207 = arith.addf %205, %206 : vector<2x32xf32>
    %208 = math.tanh %207 : vector<2x32xf32>
    %209 = arith.mulf %204, %208 : vector<2x32xf32>
    %c0_46 = arith.constant 0 : index
    %c0_47 = arith.constant 0 : index
    %210 = vector.load %arg7[%c0_46, %c0_47] : memref<16x32xf32, #tpu.memory_space<vmem>>, vector<2x32xf32>
    tpu.vector_store %arg7[%c0_46, %c0_47], %209 {strides = array<i32>} : memref<16x32xf32, #tpu.memory_space<vmem>>, vector<2x32xf32>,
    %211 = vector.extract_strided_slice %188 {offsets = [2, 0], sizes = [2, 128], strides = [1, 1]} : vector<16x128xf32> to vector<2x128xf32>
    %cst_48 = arith.constant dense<0.000000e+00> : vector<2x128xf32>
    %212 = tpu.matmul %209, %184, %cst_48 {dimension_numbers = #tpu.dot_dimension_numbers<[1], [0], [0], [1], [0, 0, 1, 1], [], []>} : vector<2x32xf32>, vector<32x128xf32>, vector<2x128xf32> -> vector<2x128xf32>
    %213 = arith.addf %211, %212 : vector<2x128xf32>
    %214 = math.tanh %213 : vector<2x128xf32>
    %215 = arith.negf %213 : vector<2x128xf32>
    %216 = math.exp %215 : vector<2x128xf32>
    %cst_49 = arith.constant 1.000000e+00 : f32
    %217 = vector.broadcast %cst_49 : f32 to vector<2x128xf32>
    %218 = arith.addf %217, %216 : vector<2x128xf32>
    %219 = arith.divf %217, %218 : vector<2x128xf32>
    %220 = arith.select %13, %214, %219 : vector<2x128xi1>, vector<2x128xf32>
    %221 = vector.extract_strided_slice %220 {offsets = [0, 0], sizes = [2, 32], strides = [1, 1]} : vector<2x128xf32> to vector<2x32xf32>
    %222 = vector.extract_strided_slice %220 {offsets = [0, 32], sizes = [2, 32], strides = [1, 1]} : vector<2x128xf32> to vector<2x32xf32>
    %223 = vector.extract_strided_slice %220 {offsets = [0, 64], sizes = [2, 32], strides = [1, 1]} : vector<2x128xf32> to vector<2x32xf32>
    %224 = vector.extract_strided_slice %220 {offsets = [0, 96], sizes = [2, 32], strides = [1, 1]} : vector<2x128xf32> to vector<2x32xf32>
    %225 = arith.mulf %222, %207 : vector<2x32xf32>
    %226 = arith.mulf %221, %223 : vector<2x32xf32>
    %227 = arith.addf %225, %226 : vector<2x32xf32>
    %228 = math.tanh %227 : vector<2x32xf32>
    %229 = arith.mulf %224, %228 : vector<2x32xf32>
    %c2_50 = arith.constant 2 : index
    %c0_51 = arith.constant 0 : index
    %230 = vector.load %arg7[%c2_50, %c0_51] : memref<16x32xf32, #tpu.memory_space<vmem>>, vector<2x32xf32>
    tpu.vector_store %arg7[%c2_50, %c0_51], %229 {strides = array<i32>} : memref<16x32xf32, #tpu.memory_space<vmem>>, vector<2x32xf32>,
    %231 = vector.extract_strided_slice %188 {offsets = [4, 0], sizes = [2, 128], strides = [1, 1]} : vector<16x128xf32> to vector<2x128xf32>
    %cst_52 = arith.constant dense<0.000000e+00> : vector<2x128xf32>
    %232 = tpu.matmul %229, %184, %cst_52 {dimension_numbers = #tpu.dot_dimension_numbers<[1], [0], [0], [1], [0, 0, 1, 1], [], []>} : vector<2x32xf32>, vector<32x128xf32>, vector<2x128xf32> -> vector<2x128xf32>
    %233 = arith.addf %231, %232 : vector<2x128xf32>
    %234 = math.tanh %233 : vector<2x128xf32>
    %235 = arith.negf %233 : vector<2x128xf32>
    %236 = math.exp %235 : vector<2x128xf32>
    %cst_53 = arith.constant 1.000000e+00 : f32
    %237 = vector.broadcast %cst_53 : f32 to vector<2x128xf32>
    %238 = arith.addf %237, %236 : vector<2x128xf32>
    %239 = arith.divf %237, %238 : vector<2x128xf32>
    %240 = arith.select %13, %234, %239 : vector<2x128xi1>, vector<2x128xf32>
    %241 = vector.extract_strided_slice %240 {offsets = [0, 0], sizes = [2, 32], strides = [1, 1]} : vector<2x128xf32> to vector<2x32xf32>
    %242 = vector.extract_strided_slice %240 {offsets = [0, 32], sizes = [2, 32], strides = [1, 1]} : vector<2x128xf32> to vector<2x32xf32>
    %243 = vector.extract_strided_slice %240 {offsets = [0, 64], sizes = [2, 32], strides = [1, 1]} : vector<2x128xf32> to vector<2x32xf32>
    %244 = vector.extract_strided_slice %240 {offsets = [0, 96], sizes = [2, 32], strides = [1, 1]} : vector<2x128xf32> to vector<2x32xf32>
    %245 = arith.mulf %242, %227 : vector<2x32xf32>
    %246 = arith.mulf %241, %243 : vector<2x32xf32>
    %247 = arith.addf %245, %246 : vector<2x32xf32>
    %248 = math.tanh %247 : vector<2x32xf32>
    %249 = arith.mulf %244, %248 : vector<2x32xf32>
    %c4_54 = arith.constant 4 : index
    %c0_55 = arith.constant 0 : index
    %250 = vector.load %arg7[%c4_54, %c0_55] : memref<16x32xf32, #tpu.memory_space<vmem>>, vector<2x32xf32>
    tpu.vector_store %arg7[%c4_54, %c0_55], %249 {strides = array<i32>} : memref<16x32xf32, #tpu.memory_space<vmem>>, vector<2x32xf32>,
    %251 = vector.extract_strided_slice %188 {offsets = [6, 0], sizes = [2, 128], strides = [1, 1]} : vector<16x128xf32> to vector<2x128xf32>
    %cst_56 = arith.constant dense<0.000000e+00> : vector<2x128xf32>
    %252 = tpu.matmul %249, %184, %cst_56 {dimension_numbers = #tpu.dot_dimension_numbers<[1], [0], [0], [1], [0, 0, 1, 1], [], []>} : vector<2x32xf32>, vector<32x128xf32>, vector<2x128xf32> -> vector<2x128xf32>
    %253 = arith.addf %251, %252 : vector<2x128xf32>
    %254 = math.tanh %253 : vector<2x128xf32>
    %255 = arith.negf %253 : vector<2x128xf32>
    %256 = math.exp %255 : vector<2x128xf32>
    %cst_57 = arith.constant 1.000000e+00 : f32
    %257 = vector.broadcast %cst_57 : f32 to vector<2x128xf32>
    %258 = arith.addf %257, %256 : vector<2x128xf32>
    %259 = arith.divf %257, %258 : vector<2x128xf32>
    %260 = arith.select %13, %254, %259 : vector<2x128xi1>, vector<2x128xf32>
    %261 = vector.extract_strided_slice %260 {offsets = [0, 0], sizes = [2, 32], strides = [1, 1]} : vector<2x128xf32> to vector<2x32xf32>
    %262 = vector.extract_strided_slice %260 {offsets = [0, 32], sizes = [2, 32], strides = [1, 1]} : vector<2x128xf32> to vector<2x32xf32>
    %263 = vector.extract_strided_slice %260 {offsets = [0, 64], sizes = [2, 32], strides = [1, 1]} : vector<2x128xf32> to vector<2x32xf32>
    %264 = vector.extract_strided_slice %260 {offsets = [0, 96], sizes = [2, 32], strides = [1, 1]} : vector<2x128xf32> to vector<2x32xf32>
    %265 = arith.mulf %262, %247 : vector<2x32xf32>
    %266 = arith.mulf %261, %263 : vector<2x32xf32>
    %267 = arith.addf %265, %266 : vector<2x32xf32>
    %268 = math.tanh %267 : vector<2x32xf32>
    %269 = arith.mulf %264, %268 : vector<2x32xf32>
    %c6_58 = arith.constant 6 : index
    %c0_59 = arith.constant 0 : index
    %270 = vector.load %arg7[%c6_58, %c0_59] : memref<16x32xf32, #tpu.memory_space<vmem>>, vector<2x32xf32>
    tpu.vector_store %arg7[%c6_58, %c0_59], %269 {strides = array<i32>} : memref<16x32xf32, #tpu.memory_space<vmem>>, vector<2x32xf32>,
    %271 = vector.extract_strided_slice %188 {offsets = [8, 0], sizes = [2, 128], strides = [1, 1]} : vector<16x128xf32> to vector<2x128xf32>
    %cst_60 = arith.constant dense<0.000000e+00> : vector<2x128xf32>
    %272 = tpu.matmul %269, %184, %cst_60 {dimension_numbers = #tpu.dot_dimension_numbers<[1], [0], [0], [1], [0, 0, 1, 1], [], []>} : vector<2x32xf32>, vector<32x128xf32>, vector<2x128xf32> -> vector<2x128xf32>
    %273 = arith.addf %271, %272 : vector<2x128xf32>
    %274 = math.tanh %273 : vector<2x128xf32>
    %275 = arith.negf %273 : vector<2x128xf32>
    %276 = math.exp %275 : vector<2x128xf32>
    %cst_61 = arith.constant 1.000000e+00 : f32
    %277 = vector.broadcast %cst_61 : f32 to vector<2x128xf32>
    %278 = arith.addf %277, %276 : vector<2x128xf32>
    %279 = arith.divf %277, %278 : vector<2x128xf32>
    %280 = arith.select %13, %274, %279 : vector<2x128xi1>, vector<2x128xf32>
    %281 = vector.extract_strided_slice %280 {offsets = [0, 0], sizes = [2, 32], strides = [1, 1]} : vector<2x128xf32> to vector<2x32xf32>
    %282 = vector.extract_strided_slice %280 {offsets = [0, 32], sizes = [2, 32], strides = [1, 1]} : vector<2x128xf32> to vector<2x32xf32>
    %283 = vector.extract_strided_slice %280 {offsets = [0, 64], sizes = [2, 32], strides = [1, 1]} : vector<2x128xf32> to vector<2x32xf32>
    %284 = vector.extract_strided_slice %280 {offsets = [0, 96], sizes = [2, 32], strides = [1, 1]} : vector<2x128xf32> to vector<2x32xf32>
    %285 = arith.mulf %282, %267 : vector<2x32xf32>
    %286 = arith.mulf %281, %283 : vector<2x32xf32>
    %287 = arith.addf %285, %286 : vector<2x32xf32>
    %288 = math.tanh %287 : vector<2x32xf32>
    %289 = arith.mulf %284, %288 : vector<2x32xf32>
    %c8_62 = arith.constant 8 : index
    %c0_63 = arith.constant 0 : index
    %290 = vector.load %arg7[%c8_62, %c0_63] : memref<16x32xf32, #tpu.memory_space<vmem>>, vector<2x32xf32>
    tpu.vector_store %arg7[%c8_62, %c0_63], %289 {strides = array<i32>} : memref<16x32xf32, #tpu.memory_space<vmem>>, vector<2x32xf32>,
    %291 = vector.extract_strided_slice %188 {offsets = [10, 0], sizes = [2, 128], strides = [1, 1]} : vector<16x128xf32> to vector<2x128xf32>
    %cst_64 = arith.constant dense<0.000000e+00> : vector<2x128xf32>
    %292 = tpu.matmul %289, %184, %cst_64 {dimension_numbers = #tpu.dot_dimension_numbers<[1], [0], [0], [1], [0, 0, 1, 1], [], []>} : vector<2x32xf32>, vector<32x128xf32>, vector<2x128xf32> -> vector<2x128xf32>
    %293 = arith.addf %291, %292 : vector<2x128xf32>
    %294 = math.tanh %293 : vector<2x128xf32>
    %295 = arith.negf %293 : vector<2x128xf32>
    %296 = math.exp %295 : vector<2x128xf32>
    %cst_65 = arith.constant 1.000000e+00 : f32
    %297 = vector.broadcast %cst_65 : f32 to vector<2x128xf32>
    %298 = arith.addf %297, %296 : vector<2x128xf32>
    %299 = arith.divf %297, %298 : vector<2x128xf32>
    %300 = arith.select %13, %294, %299 : vector<2x128xi1>, vector<2x128xf32>
    %301 = vector.extract_strided_slice %300 {offsets = [0, 0], sizes = [2, 32], strides = [1, 1]} : vector<2x128xf32> to vector<2x32xf32>
    %302 = vector.extract_strided_slice %300 {offsets = [0, 32], sizes = [2, 32], strides = [1, 1]} : vector<2x128xf32> to vector<2x32xf32>
    %303 = vector.extract_strided_slice %300 {offsets = [0, 64], sizes = [2, 32], strides = [1, 1]} : vector<2x128xf32> to vector<2x32xf32>
    %304 = vector.extract_strided_slice %300 {offsets = [0, 96], sizes = [2, 32], strides = [1, 1]} : vector<2x128xf32> to vector<2x32xf32>
    %305 = arith.mulf %302, %287 : vector<2x32xf32>
    %306 = arith.mulf %301, %303 : vector<2x32xf32>
    %307 = arith.addf %305, %306 : vector<2x32xf32>
    %308 = math.tanh %307 : vector<2x32xf32>
    %309 = arith.mulf %304, %308 : vector<2x32xf32>
    %c10_66 = arith.constant 10 : index
    %c0_67 = arith.constant 0 : index
    %310 = vector.load %arg7[%c10_66, %c0_67] : memref<16x32xf32, #tpu.memory_space<vmem>>, vector<2x32xf32>
    tpu.vector_store %arg7[%c10_66, %c0_67], %309 {strides = array<i32>} : memref<16x32xf32, #tpu.memory_space<vmem>>, vector<2x32xf32>,
    %311 = vector.extract_strided_slice %188 {offsets = [12, 0], sizes = [2, 128], strides = [1, 1]} : vector<16x128xf32> to vector<2x128xf32>
    %cst_68 = arith.constant dense<0.000000e+00> : vector<2x128xf32>
    %312 = tpu.matmul %309, %184, %cst_68 {dimension_numbers = #tpu.dot_dimension_numbers<[1], [0], [0], [1], [0, 0, 1, 1], [], []>} : vector<2x32xf32>, vector<32x128xf32>, vector<2x128xf32> -> vector<2x128xf32>
    %313 = arith.addf %311, %312 : vector<2x128xf32>
    %314 = math.tanh %313 : vector<2x128xf32>
    %315 = arith.negf %313 : vector<2x128xf32>
    %316 = math.exp %315 : vector<2x128xf32>
    %cst_69 = arith.constant 1.000000e+00 : f32
    %317 = vector.broadcast %cst_69 : f32 to vector<2x128xf32>
    %318 = arith.addf %317, %316 : vector<2x128xf32>
    %319 = arith.divf %317, %318 : vector<2x128xf32>
    %320 = arith.select %13, %314, %319 : vector<2x128xi1>, vector<2x128xf32>
    %321 = vector.extract_strided_slice %320 {offsets = [0, 0], sizes = [2, 32], strides = [1, 1]} : vector<2x128xf32> to vector<2x32xf32>
    %322 = vector.extract_strided_slice %320 {offsets = [0, 32], sizes = [2, 32], strides = [1, 1]} : vector<2x128xf32> to vector<2x32xf32>
    %323 = vector.extract_strided_slice %320 {offsets = [0, 64], sizes = [2, 32], strides = [1, 1]} : vector<2x128xf32> to vector<2x32xf32>
    %324 = vector.extract_strided_slice %320 {offsets = [0, 96], sizes = [2, 32], strides = [1, 1]} : vector<2x128xf32> to vector<2x32xf32>
    %325 = arith.mulf %322, %307 : vector<2x32xf32>
    %326 = arith.mulf %321, %323 : vector<2x32xf32>
    %327 = arith.addf %325, %326 : vector<2x32xf32>
    %328 = math.tanh %327 : vector<2x32xf32>
    %329 = arith.mulf %324, %328 : vector<2x32xf32>
    %c12_70 = arith.constant 12 : index
    %c0_71 = arith.constant 0 : index
    %330 = vector.load %arg7[%c12_70, %c0_71] : memref<16x32xf32, #tpu.memory_space<vmem>>, vector<2x32xf32>
    tpu.vector_store %arg7[%c12_70, %c0_71], %329 {strides = array<i32>} : memref<16x32xf32, #tpu.memory_space<vmem>>, vector<2x32xf32>,
    %331 = vector.extract_strided_slice %188 {offsets = [14, 0], sizes = [2, 128], strides = [1, 1]} : vector<16x128xf32> to vector<2x128xf32>
    %cst_72 = arith.constant dense<0.000000e+00> : vector<2x128xf32>
    %332 = tpu.matmul %329, %184, %cst_72 {dimension_numbers = #tpu.dot_dimension_numbers<[1], [0], [0], [1], [0, 0, 1, 1], [], []>} : vector<2x32xf32>, vector<32x128xf32>, vector<2x128xf32> -> vector<2x128xf32>
    %333 = arith.addf %331, %332 : vector<2x128xf32>
    %334 = math.tanh %333 : vector<2x128xf32>
    %335 = arith.negf %333 : vector<2x128xf32>
    %336 = math.exp %335 : vector<2x128xf32>
    %cst_73 = arith.constant 1.000000e+00 : f32
    %337 = vector.broadcast %cst_73 : f32 to vector<2x128xf32>
    %338 = arith.addf %337, %336 : vector<2x128xf32>
    %339 = arith.divf %337, %338 : vector<2x128xf32>
    %340 = arith.select %13, %334, %339 : vector<2x128xi1>, vector<2x128xf32>
    %341 = vector.extract_strided_slice %340 {offsets = [0, 0], sizes = [2, 32], strides = [1, 1]} : vector<2x128xf32> to vector<2x32xf32>
    %342 = vector.extract_strided_slice %340 {offsets = [0, 32], sizes = [2, 32], strides = [1, 1]} : vector<2x128xf32> to vector<2x32xf32>
    %343 = vector.extract_strided_slice %340 {offsets = [0, 64], sizes = [2, 32], strides = [1, 1]} : vector<2x128xf32> to vector<2x32xf32>
    %344 = vector.extract_strided_slice %340 {offsets = [0, 96], sizes = [2, 32], strides = [1, 1]} : vector<2x128xf32> to vector<2x32xf32>
    %345 = arith.mulf %342, %327 : vector<2x32xf32>
    %346 = arith.mulf %341, %343 : vector<2x32xf32>
    %347 = arith.addf %345, %346 : vector<2x32xf32>
    %348 = math.tanh %347 : vector<2x32xf32>
    %349 = arith.mulf %344, %348 : vector<2x32xf32>
    %c14_74 = arith.constant 14 : index
    %c0_75 = arith.constant 0 : index
    %350 = vector.load %arg7[%c14_74, %c0_75] : memref<16x32xf32, #tpu.memory_space<vmem>>, vector<2x32xf32>
    tpu.vector_store %arg7[%c14_74, %c0_75], %349 {strides = array<i32>} : memref<16x32xf32, #tpu.memory_space<vmem>>, vector<2x32xf32>,
    %c0_76 = arith.constant 0 : index
    %c0_77 = arith.constant 0 : index
    %351 = vector.load %arg7[%c0_76, %c0_77] : memref<16x32xf32, #tpu.memory_space<vmem>>, vector<16x32xf32>
    %c0_78 = arith.constant 0 : index
    %c0_79 = arith.constant 0 : index
    %352 = vector.load %arg5[%c0_78, %c0_79] : memref<33x32xf32, #tpu.memory_space<vmem>>, vector<32x32xf32>
    %c32_80 = arith.constant 32 : index
    %c0_81 = arith.constant 0 : index
    %353 = vector.load %arg5[%c32_80, %c0_81] : memref<33x32xf32, #tpu.memory_space<vmem>>, vector<1x32xf32>
    %cst_82 = arith.constant dense<0.000000e+00> : vector<16x32xf32>
    %354 = tpu.matmul %351, %352, %cst_82 {dimension_numbers = #tpu.dot_dimension_numbers<[1], [0], [0], [1], [0, 0, 1, 1], [], []>} : vector<16x32xf32>, vector<32x32xf32>, vector<16x32xf32> -> vector<16x32xf32>
    %355 = vector.broadcast %353 : vector<1x32xf32> to vector<16x32xf32>
    %356 = arith.addf %354, %355 : vector<16x32xf32>
    %c0_83 = arith.constant 0 : index
    %c0_84 = arith.constant 0 : index
    %357 = vector.load %arg6[%c0_83, %c0_84] : memref<16x32xf32, #tpu.memory_space<vmem>>, vector<16x32xf32>
    tpu.vector_store %arg6[%c0_83, %c0_84], %356 {strides = array<i32>} : memref<16x32xf32, #tpu.memory_space<vmem>>, vector<16x32xf32>,
    return
  }
  func.func @transform_0(%arg0: i32) -> (i32, i32) {
    %c0_i32 = arith.constant 0 : i32
    %c0_i32_0 = arith.constant 0 : i32
    %c0_i32_1 = arith.constant 0 : i32
    return %c0_i32, %c0_i32_0 : i32, i32
  }
  func.func @transform_1(%arg0: i32) -> (i32, i32) {
    %c0_i32 = arith.constant 0 : i32
    %c0_i32_0 = arith.constant 0 : i32
    %c0_i32_1 = arith.constant 0 : i32
    return %c0_i32, %c0_i32_0 : i32, i32
  }
  func.func @transform_2(%arg0: i32) -> (i32, i32) {
    %c0_i32 = arith.constant 0 : i32
    %c0_i32_0 = arith.constant 0 : i32
    %c0_i32_1 = arith.constant 0 : i32
    return %c0_i32, %c0_i32_0 : i32, i32
  }
  func.func @transform_3(%arg0: i32) -> (i32, i32) {
    %c0_i32 = arith.constant 0 : i32
    %c0_i32_0 = arith.constant 0 : i32
    %c0_i32_1 = arith.constant 0 : i32
    return %c0_i32, %c0_i32_0 : i32, i32
  }
  func.func @transform_4(%arg0: i32) -> (i32, i32) {
    %c0_i32 = arith.constant 0 : i32
    %c0_i32_0 = arith.constant 0 : i32
    %c0_i32_1 = arith.constant 0 : i32
    return %c0_i32, %c0_i32_0 : i32, i32
  }
  func.func @transform_5(%arg0: i32) -> (i32, i32) {
    %c0_i32 = arith.constant 0 : i32
    %c0_i32_0 = arith.constant 0 : i32
    %c0_i32_1 = arith.constant 0 : i32
    return %c0_i32, %c0_i32_0 : i32, i32
  }
}

</mosaic_0001>

<llo_original>
// kernel: simple_model_forward.1
$region0: #{simple_model_forward.1}
  #allocation0 [shape = 'u32[]', space=smem, size = 0x4, offset = 0x4, fixed_abs, tag = 'smem constant byte address 0x4 - core index']
  #allocation1 [shape = 'u32[144,128]{1,0:T(1,128)}', space=vmem, size = 0x12000, scoped, tag = 'internal scratch']
  #allocation2 [shape = 'f32[16,32]{1,0:T(8,128)}', space=vmem, size = 0x2000, scoped, tag = 'scratch operand']
  %s0 = inlined_call_operand.vmem [shape: s32[16,1], index: 0, kind: input, shape index: {}]
  %s1 = inlined_call_operand.vmem [shape: f32[32,16], index: 1, kind: input, shape index: {}]
  %s2 = inlined_call_operand.vmem [shape: f32[49,128], index: 2, kind: input, shape index: {}]
  %s3 = inlined_call_operand.vmem [shape: f32[65,128], index: 3, kind: input, shape index: {}]
  %s4 = inlined_call_operand.vmem [shape: f32[33,32], index: 4, kind: input, shape index: {}]
  %s5 = inlined_call_operand.vmem [shape: f32[16,32], index: 5, kind: output, shape index: {}]
  %s6 = sld [smem:[#allocation0]]
  $region30: #{simple_model_forward.1} parent=0
    _
  %s8 = ssub.s32 1, %s6
  %s9 = scalar_select 0, %s8, %s6
  // Predicated region
  $region2: #{simple_model_forward.1} parent=0 // pred_check
    _
  $region3: #{simple_model_forward.1} parent=0 // pred_check_branch
    %11 = sbr.rel (0) target = $region5
  $region4: #{simple_model_forward.1} parent=0 // pred_region
    _
  $region5: #{simple_model_forward.1} parent=0 // pred_fallthru
    _
  // Predicated region
  $region6: #{simple_model_forward.1} parent=0 // pred_check
    _
  $region7: #{simple_model_forward.1} parent=0 // pred_check_branch
    %13 = sbr.rel (0) target = $region9
  $region8: #{simple_model_forward.1} parent=0 // pred_region
    _
  $region9: #{simple_model_forward.1} parent=0 // pred_fallthru
    _
  // Predicated region
  $region10: #{simple_model_forward.1} parent=0 // pred_check
    _
  $region11: #{simple_model_forward.1} parent=0 // pred_check_branch
    %15 = sbr.rel (0) target = $region13
  $region12: #{simple_model_forward.1} parent=0 // pred_region
    _
  $region13: #{simple_model_forward.1} parent=0 // pred_fallthru
    _
  // Predicated region
  $region14: #{simple_model_forward.1} parent=0 // pred_check
    _
  $region15: #{simple_model_forward.1} parent=0 // pred_check_branch
    %17 = sbr.rel (0) target = $region17
  $region16: #{simple_model_forward.1} parent=0 // pred_region
    _
  $region17: #{simple_model_forward.1} parent=0 // pred_fallthru
    _
  // Predicated region
  $region18: #{simple_model_forward.1} parent=0 // pred_check
    _
  $region19: #{simple_model_forward.1} parent=0 // pred_check_branch
    %19 = sbr.rel (0) target = $region21
  $region20: #{simple_model_forward.1} parent=0 // pred_region
    _
  $region21: #{simple_model_forward.1} parent=0 // pred_fallthru
    _
  %v20 = vld [vmem:[%s0] sm:$0xff]
  %v21 = vld [vmem:[%s0 + $0x8] sm:$0xff]
  %v22 = vlaneseq
  %v23 = vand.u32 %v22, 127
  %24 = vset.pattern.permute.xlu0 0
  %25 = vperm.xlu0 %24, %v20
  %v26 = vpop.permute.xlu0 %25
  %27 = vset.pattern.permute.xlu0 0
  %28 = vperm.xlu0 %27, %v21
  %v29 = vpop.permute.xlu0 %28
  %vm30 = vcmp.eq.s32.totalorder %v23, %v26
  %vm31 = vcmp.eq.s32.totalorder %v23, %v29
  %v32 = vsel %vm30, 1, 0
  %v33 = vsel %vm31, 1, 0
  %v34 = vcvt.s32.f32 %v32
  %v35 = vcvt.s32.f32 %v33
  %v36 = vld [vmem:[%s1] sm:$0xff]
  %v37 = vld [vmem:[%s1 + $0x8] sm:$0xff]
  %v38 = vld [vmem:[%s1 + $0x10] sm:$0xff]
  %v39 = vld [vmem:[%s1 + $0x18] sm:$0xff]
  %vm40 = vcmask 261120
  %v42 = vsel %vm40, %v34, 0
  %v45 = vsel %vm40, %v35, 0
  %47 = vmatprep.subr.mxu0 0.0
  %48 = vmatpush1.msra.mxu0 %v36
  %49 = vmatprep.subr.mxu0 0.0
  %50 = vmatpush1.msra.mxu0 %v37
  %51 = vmatprep.subr.mxu0 0.0
  %52 = vmatpush1.msra.mxu0 %v38
  %53 = vmatprep.subr.mxu0 0.0
  %54 = vmatpush1.msra.mxu0 %v39
  %55 = vmatprep.subr.mxu0 0.0
  %56 = vmatpush1.msra.mxu0 0.0
  %57 = vmatprep.subr.mxu0 0.0
  %58 = vmatpush1.msra.mxu0 0.0
  %59 = vmatprep.subr.mxu0 0.0
  %60 = vmatpush1.msra.mxu0 0.0
  %61 = vmatprep.subr.mxu0 0.0
  %62 = vmatpush1.msra.mxu0 0.0
  %63 = vmatprep.subr.mxu0 0.0
  %64 = vmatpush1.msra.mxu0 0.0
  %65 = vmatprep.subr.mxu0 0.0
  %66 = vmatpush1.msra.mxu0 0.0
  %67 = vmatprep.subr.mxu0 0.0
  %68 = vmatpush1.msra.mxu0 0.0
  %69 = vmatprep.subr.mxu0 0.0
  %70 = vmatpush1.msra.mxu0 0.0
  %71 = vmatprep.subr.mxu0 0.0
  %72 = vmatpush1.msra.mxu0 0.0
  %73 = vmatprep.subr.mxu0 0.0
  %74 = vmatpush1.msra.mxu0 0.0
  %75 = vmatprep.subr.mxu0 0.0
  %76 = vmatpush1.msra.mxu0 0.0
  %77 = vmatprep.subr.mxu0 0.0
  %78 = vmatpush1.msra.mxu0 0.0
  %79 = vmatprep.subr.mxu0 0.0
  %80 = vmatpush1.msra.mxu0 0.0
  %81 = vmatprep.subr.mxu0 0.0
  %82 = vmatpush1.msra.mxu0 0.0
  %83 = vmatprep.subr.mxu0 0.0
  %84 = vmatpush1.msra.mxu0 0.0
  %85 = vmatprep.subr.mxu0 0.0
  %86 = vmatpush1.msra.mxu0 0.0
  %87 = vmatprep.subr.mxu0 0.0
  %88 = vmatpush1.msra.mxu0 0.0
  %89 = vmatprep.subr.mxu0 0.0
  %90 = vmatpush1.msra.mxu0 0.0
  %91 = vmatprep.subr.mxu0 0.0
  %92 = vmatpush1.msra.mxu0 0.0
  %93 = vmatprep.subr.mxu0 0.0
  %94 = vmatpush1.msra.mxu0 0.0
  %95 = vmatprep.subr.mxu0 0.0
  %96 = vmatpush1.msra.mxu0 0.0
  %97 = vmatprep.subr.mxu0 0.0
  %98 = vmatpush1.msra.mxu0 0.0
  %99 = vmatprep.subr.mxu0 0.0
  %100 = vmatpush1.msra.mxu0 0.0
  %101 = vmatprep.subr.mxu0 0.0
  %102 = vmatpush1.msra.mxu0 0.0
  %103 = vmatprep.subr.mxu0 0.0
  %104 = vmatpush1.msra.mxu0 0.0
  %105 = vmatprep.subr.mxu0 0.0
  %106 = vmatpush1.msra.mxu0 0.0
  %107 = vmatprep.subr.mxu0 0.0
  %108 = vmatpush1.msra.mxu0 0.0
  %109 = vmatprep.subr.mxu0 0.0
  %110 = vmatpush1.msra.mxu0 0.0
  %111 = vmatprep.mubr.f32.mxu0 0.0
  %112 = vmatmul.mubr.f32.gmra.mrb[0].mxu0 %v42
  %v113 = vpop.f32.mrb[0].mxu0
  %v114 = vadd.f32 0.0, %v113
  %v115 = vpop.f32.mrb[0].mxu0
  %116 = vmatprep.mubr.f32.mxu0 0.0
  %117 = vmatmul.mubr.f32.gmra.mrb[0].mxu0 %v45
  %v118 = vpop.f32.mrb[0].mxu0
  %v119 = vadd.f32 0.0, %v118
  %v120 = vpop.f32.mrb[0].mxu0
  %121 = vdwg.mxu0
  %vm122 = vcmp.ge.s32.totalorder %v23, 64
  %vm123 = vcmp.lt.s32.totalorder %v23, 96
  %vm124 = vmand %vm122, %vm123
  %v125 = vld [vmem:[%s2] sm:$0xff]
  %v126 = vld [vmem:[%s2 + $0x8] sm:$0xff]
  %v127 = vld [vmem:[%s2 + $0x10] sm:$0xff]
  %v128 = vld [vmem:[%s2 + $0x18] sm:$0xff]
  %v129 = vld [vmem:[%s2 + $0x20] sm:$0xff]
  %v130 = vld [vmem:[%s2 + $0x28] sm:$0xff]
  %v131 = vld [vmem:[%s2 + $0x30] sm:$0x1]
  %v132 = vlaneseq
  %v133 = vshrl.u32 %v132, 7
  %v134 = vsub.s32 0, %v133
  %v135 = vrot.slane %v131, %v134
  %vm136 = vcmask 130048
  %v138 = vsel %vm136, %v114, 0
  %v141 = vsel %vm136, %v119, 0
  %143 = vmatprep.subr.mxu0 0.0
  %144 = vmatpush1.msra.mxu0 %v125
  %145 = vmatprep.subr.mxu0 0.0
  %146 = vmatpush1.msra.mxu0 %v126
  %147 = vmatprep.subr.mxu0 0.0
  %148 = vmatpush1.msra.mxu0 0.0
  %149 = vmatprep.subr.mxu0 0.0
  %150 = vmatpush1.msra.mxu0 0.0
  %151 = vmatprep.subr.mxu0 0.0
  %152 = vmatpush1.msra.mxu0 0.0
  %153 = vmatprep.subr.mxu0 0.0
  %154 = vmatpush1.msra.mxu0 0.0
  %155 = vmatprep.subr.mxu0 0.0
  %156 = vmatpush1.msra.mxu0 0.0
  %157 = vmatprep.subr.mxu0 0.0
  %158 = vmatpush1.msra.mxu0 0.0
  %159 = vmatprep.subr.mxu0 0.0
  %160 = vmatpush1.msra.mxu0 0.0
  %161 = vmatprep.subr.mxu0 0.0
  %162 = vmatpush1.msra.mxu0 0.0
  %163 = vmatprep.subr.mxu0 0.0
  %164 = vmatpush1.msra.mxu0 0.0
  %165 = vmatprep.subr.mxu0 0.0
  %166 = vmatpush1.msra.mxu0 0.0
  %167 = vmatprep.subr.mxu0 0.0
  %168 = vmatpush1.msra.mxu0 0.0
  %169 = vmatprep.subr.mxu0 0.0
  %170 = vmatpush1.msra.mxu0 0.0
  %171 = vmatprep.subr.mxu0 0.0
  %172 = vmatpush1.msra.mxu0 0.0
  %173 = vmatprep.subr.mxu0 0.0
  %174 = vmatpush1.msra.mxu0 0.0
  %175 = vmatprep.subr.mxu0 0.0
  %176 = vmatpush1.msra.mxu0 0.0
  %177 = vmatprep.subr.mxu0 0.0
  %178 = vmatpush1.msra.mxu0 0.0
  %179 = vmatprep.subr.mxu0 0.0
  %180 = vmatpush1.msra.mxu0 0.0
  %181 = vmatprep.subr.mxu0 0.0
  %182 = vmatpush1.msra.mxu0 0.0
  %183 = vmatprep.subr.mxu0 0.0
  %184 = vmatpush1.msra.mxu0 0.0
  %185 = vmatprep.subr.mxu0 0.0
  %186 = vmatpush1.msra.mxu0 0.0
  %187 = vmatprep.subr.mxu0 0.0
  %188 = vmatpush1.msra.mxu0 0.0
  %189 = vmatprep.subr.mxu0 0.0
  %190 = vmatpush1.msra.mxu0 0.0
  %191 = vmatprep.subr.mxu0 0.0
  %192 = vmatpush1.msra.mxu0 0.0
  %193 = vmatprep.subr.mxu0 0.0
  %194 = vmatpush1.msra.mxu0 0.0
  %195 = vmatprep.subr.mxu0 0.0
  %196 = vmatpush1.msra.mxu0 0.0
  %197 = vmatprep.subr.mxu0 0.0
  %198 = vmatpush1.msra.mxu0 0.0
  %199 = vmatprep.subr.mxu0 0.0
  %200 = vmatpush1.msra.mxu0 0.0
  %201 = vmatprep.subr.mxu0 0.0
  %202 = vmatpush1.msra.mxu0 0.0
  %203 = vmatprep.subr.mxu0 0.0
  %204 = vmatpush1.msra.mxu0 0.0
  %205 = vmatprep.subr.mxu0 0.0
  %206 = vmatpush1.msra.mxu0 0.0
  %207 = vmatprep.mubr.f32.mxu0 0.0
  %208 = vmatmul.mubr.f32.gmra.mrb[0].mxu0 %v138
  %v209 = vpop.f32.mrb[0].mxu0
  %v210 = vadd.f32 %v135, %v209
  %v211 = vpop.f32.mrb[0].mxu0
  %212 = vmatprep.mubr.f32.mxu0 0.0
  %213 = vmatmul.mubr.f32.gmra.mrb[0].mxu0 %v141
  %v214 = vpop.f32.mrb[0].mxu0
  %v215 = vadd.f32 %v135, %v214
  %v216 = vpop.f32.mrb[0].mxu0
  %217 = vdwg.mxu0
  %v219 = vsel %vm40, 0.0, 0
  %221 = vmatprep.subr.mxu0 0.0
  %222 = vmatpush1.msra.mxu0 %v127
  %223 = vmatprep.subr.mxu0 0.0
  %224 = vmatpush1.msra.mxu0 %v128
  %225 = vmatprep.subr.mxu0 0.0
  %226 = vmatpush1.msra.mxu0 %v129
  %227 = vmatprep.subr.mxu0 0.0
  %228 = vmatpush1.msra.mxu0 %v130
  %229 = vmatprep.subr.mxu0 0.0
  %230 = vmatpush1.msra.mxu0 0.0
  %231 = vmatprep.subr.mxu0 0.0
  %232 = vmatpush1.msra.mxu0 0.0
  %233 = vmatprep.subr.mxu0 0.0
  %234 = vmatpush1.msra.mxu0 0.0
  %235 = vmatprep.subr.mxu0 0.0
  %236 = vmatpush1.msra.mxu0 0.0
  %237 = vmatprep.subr.mxu0 0.0
  %238 = vmatpush1.msra.mxu0 0.0
  %239 = vmatprep.subr.mxu0 0.0
  %240 = vmatpush1.msra.mxu0 0.0
  %241 = vmatprep.subr.mxu0 0.0
  %242 = vmatpush1.msra.mxu0 0.0
  %243 = vmatprep.subr.mxu0 0.0
  %244 = vmatpush1.msra.mxu0 0.0
  %245 = vmatprep.subr.mxu0 0.0
  %246 = vmatpush1.msra.mxu0 0.0
  %247 = vmatprep.subr.mxu0 0.0
  %248 = vmatpush1.msra.mxu0 0.0
  %249 = vmatprep.subr.mxu0 0.0
  %250 = vmatpush1.msra.mxu0 0.0
  %251 = vmatprep.subr.mxu0 0.0
  %252 = vmatpush1.msra.mxu0 0.0
  %253 = vmatprep.subr.mxu0 0.0
  %254 = vmatpush1.msra.mxu0 0.0
  %255 = vmatprep.subr.mxu0 0.0
  %256 = vmatpush1.msra.mxu0 0.0
  %257 = vmatprep.subr.mxu0 0.0
  %258 = vmatpush1.msra.mxu0 0.0
  %259 = vmatprep.subr.mxu0 0.0
  %260 = vmatpush1.msra.mxu0 0.0
  %261 = vmatprep.subr.mxu0 0.0
  %262 = vmatpush1.msra.mxu0 0.0
  %263 = vmatprep.subr.mxu0 0.0
  %264 = vmatpush1.msra.mxu0 0.0
  %265 = vmatprep.subr.mxu0 0.0
  %266 = vmatpush1.msra.mxu0 0.0
  %267 = vmatprep.subr.mxu0 0.0
  %268 = vmatpush1.msra.mxu0 0.0
  %269 = vmatprep.subr.mxu0 0.0
  %270 = vmatpush1.msra.mxu0 0.0
  %271 = vmatprep.subr.mxu0 0.0
  %272 = vmatpush1.msra.mxu0 0.0
  %273 = vmatprep.subr.mxu0 0.0
  %274 = vmatpush1.msra.mxu0 0.0
  %275 = vmatprep.subr.mxu0 0.0
  %276 = vmatpush1.msra.mxu0 0.0
  %277 = vmatprep.subr.mxu0 0.0
  %278 = vmatpush1.msra.mxu0 0.0
  %279 = vmatprep.subr.mxu0 0.0
  %280 = vmatpush1.msra.mxu0 0.0
  %281 = vmatprep.subr.mxu0 0.0
  %282 = vmatpush1.msra.mxu0 0.0
  %283 = vmatprep.subr.mxu0 0.0
  %284 = vmatpush1.msra.mxu0 0.0
  %285 = vmatprep.mubr.f32.mxu0 0.0
  %286 = vmatmul.mubr.f32.gmra.mrb[0].mxu0 %v219
  %v287 = vpop.f32.mrb[0].mxu0
  %v288 = vadd.f32 0.0, %v287
  %v289 = vpop.f32.mrb[0].mxu0
  %290 = vdwg.mxu0
  %v291 = vadd.f32 %v210, %v288
  %v292 = vtanh.pop %v291
  %v293 = vxor.u32 %v291, 2147483648
  %v294 = vmul.f32 %v293, 1.442695
  %v295 = vpow.pop %v294
  %v296 = vadd.f32 %v295, 1.0
  %v297 = vrcp.pop %v296
  %v298 = vmul.f32 1.0, %v297
  %v299 = vsel %vm124, %v292, %v298
  %v300 = vmul.f32 %v299, 0.0
  %302 = vrot.lane.b32.xlu0 %v299, 64
  %v303 = vpop.permute.xlu0 %302
  %v305 = vmul.f32 %v299, %v303
  %307 = vrot.lane.b32.xlu0 %v305, 32
  %v308 = vpop.permute.xlu0 %307
  %v310 = vadd.f32 %v300, %v308
  %v311 = vtanh.pop %v310
  %313 = vrot.lane.b32.xlu0 %v311, 64
  %v314 = vpop.permute.xlu0 %313
  %v316 = vmul.f32 %v299, %v314
  %318 = vrot.lane.b32.xlu0 %v316, 32
  %v319 = vpop.permute.xlu0 %318
  %vm321 = vcmask 254976
  %322 = vst.msk [vmem:[#allocation2] sm:$0x3] %vm321, %v319
  %v323 = vsel %vm40, %v319, 0
  %325 = vmatprep.subr.mxu0 0.0
  %326 = vmatpush1.msra.mxu0 %v127
  %327 = vmatprep.subr.mxu0 0.0
  %328 = vmatpush1.msra.mxu0 %v128
  %329 = vmatprep.subr.mxu0 0.0
  %330 = vmatpush1.msra.mxu0 %v129
  %331 = vmatprep.subr.mxu0 0.0
  %332 = vmatpush1.msra.mxu0 %v130
  %333 = vmatprep.subr.mxu0 0.0
  %334 = vmatpush1.msra.mxu0 0.0
  %335 = vmatprep.subr.mxu0 0.0
  %336 = vmatpush1.msra.mxu0 0.0
  %337 = vmatprep.subr.mxu0 0.0
  %338 = vmatpush1.msra.mxu0 0.0
  %339 = vmatprep.subr.mxu0 0.0
  %340 = vmatpush1.msra.mxu0 0.0
  %341 = vmatprep.subr.mxu0 0.0
  %342 = vmatpush1.msra.mxu0 0.0
  %343 = vmatprep.subr.mxu0 0.0
  %344 = vmatpush1.msra.mxu0 0.0
  %345 = vmatprep.subr.mxu0 0.0
  %346 = vmatpush1.msra.mxu0 0.0
  %347 = vmatprep.subr.mxu0 0.0
  %348 = vmatpush1.msra.mxu0 0.0
  %349 = vmatprep.subr.mxu0 0.0
  %350 = vmatpush1.msra.mxu0 0.0
  %351 = vmatprep.subr.mxu0 0.0
  %352 = vmatpush1.msra.mxu0 0.0
  %353 = vmatprep.subr.mxu0 0.0
  %354 = vmatpush1.msra.mxu0 0.0
  %355 = vmatprep.subr.mxu0 0.0
  %356 = vmatpush1.msra.mxu0 0.0
  %357 = vmatprep.subr.mxu0 0.0
  %358 = vmatpush1.msra.mxu0 0.0
  %359 = vmatprep.subr.mxu0 0.0
  %360 = vmatpush1.msra.mxu0 0.0
  %361 = vmatprep.subr.mxu0 0.0
  %362 = vmatpush1.msra.mxu0 0.0
  %363 = vmatprep.subr.mxu0 0.0
  %364 = vmatpush1.msra.mxu0 0.0
  %365 = vmatprep.subr.mxu0 0.0
  %366 = vmatpush1.msra.mxu0 0.0
  %367 = vmatprep.subr.mxu0 0.0
  %368 = vmatpush1.msra.mxu0 0.0
  %369 = vmatprep.subr.mxu0 0.0
  %370 = vmatpush1.msra.mxu0 0.0
  %371 = vmatprep.subr.mxu0 0.0
  %372 = vmatpush1.msra.mxu0 0.0
  %373 = vmatprep.subr.mxu0 0.0
  %374 = vmatpush1.msra.mxu0 0.0
  %375 = vmatprep.subr.mxu0 0.0
  %376 = vmatpush1.msra.mxu0 0.0
  %377 = vmatprep.subr.mxu0 0.0
  %378 = vmatpush1.msra.mxu0 0.0
  %379 = vmatprep.subr.mxu0 0.0
  %380 = vmatpush1.msra.mxu0 0.0
  %381 = vmatprep.subr.mxu0 0.0
  %382 = vmatpush1.msra.mxu0 0.0
  %383 = vmatprep.subr.mxu0 0.0
  %384 = vmatpush1.msra.mxu0 0.0
  %385 = vmatprep.subr.mxu0 0.0
  %386 = vmatpush1.msra.mxu0 0.0
  %387 = vmatprep.subr.mxu0 0.0
  %388 = vmatpush1.msra.mxu0 0.0
  %389 = vmatprep.mubr.f32.mxu0 0.0
  %390 = vmatmul.mubr.f32.gmra.mrb[0].mxu0 %v323
  %v391 = vpop.f32.mrb[0].mxu0
  %v392 = vadd.f32 0.0, %v391
  %v393 = vpop.f32.mrb[0].mxu0
  %394 = vdwg.mxu0
  %v396 = vrot.slane %v392, 6
  %v398 = vadd.f32 %v210, %v396
  %v399 = vtanh.pop %v398
  %v400 = vxor.u32 %v398, 2147483648
  %v401 = vmul.f32 %v400, 1.442695
  %v402 = vpow.pop %v401
  %v403 = vadd.f32 %v402, 1.0
  %v404 = vrcp.pop %v403
  %v405 = vmul.f32 1.0, %v404
  %v406 = vsel %vm124, %v399, %v405
  %v408 = vrot.slane %v310, 6
  %v410 = vmul.f32 %v406, %v408
  %412 = vrot.lane.b32.xlu0 %v406, 64
  %v413 = vpop.permute.xlu0 %412
  %v415 = vmul.f32 %v406, %v413
  %417 = vrot.lane.b32.xlu0 %v415, 32
  %v418 = vpop.permute.xlu0 %417
  %v420 = vadd.f32 %v410, %v418
  %v421 = vtanh.pop %v420
  %423 = vrot.lane.b32.xlu0 %v421, 64
  %v424 = vpop.permute.xlu0 %423
  %v426 = vmul.f32 %v406, %v424
  %428 = vrot.lane.b32.xlu0 %v426, 32
  %v429 = vpop.permute.xlu0 %428
  %vm431 = vcmask 257026
  %432 = vst.msk [vmem:[#allocation2] sm:$0xc] %vm431, %v429
  %v433 = vrot.slane %v426, 2
  %434 = vrot.lane.b32.xlu0 %v433, 32
  %v435 = vpop.permute.xlu0 %434
  %v436 = vsel %vm40, %v435, 0
  %438 = vmatprep.subr.mxu0 0.0
  %439 = vmatpush1.msra.mxu0 %v127
  %440 = vmatprep.subr.mxu0 0.0
  %441 = vmatpush1.msra.mxu0 %v128
  %442 = vmatprep.subr.mxu0 0.0
  %443 = vmatpush1.msra.mxu0 %v129
  %444 = vmatprep.subr.mxu0 0.0
  %445 = vmatpush1.msra.mxu0 %v130
  %446 = vmatprep.subr.mxu0 0.0
  %447 = vmatpush1.msra.mxu0 0.0
  %448 = vmatprep.subr.mxu0 0.0
  %449 = vmatpush1.msra.mxu0 0.0
  %450 = vmatprep.subr.mxu0 0.0
  %451 = vmatpush1.msra.mxu0 0.0
  %452 = vmatprep.subr.mxu0 0.0
  %453 = vmatpush1.msra.mxu0 0.0
  %454 = vmatprep.subr.mxu0 0.0
  %455 = vmatpush1.msra.mxu0 0.0
  %456 = vmatprep.subr.mxu0 0.0
  %457 = vmatpush1.msra.mxu0 0.0
  %458 = vmatprep.subr.mxu0 0.0
  %459 = vmatpush1.msra.mxu0 0.0
  %460 = vmatprep.subr.mxu0 0.0
  %461 = vmatpush1.msra.mxu0 0.0
  %462 = vmatprep.subr.mxu0 0.0
  %463 = vmatpush1.msra.mxu0 0.0
  %464 = vmatprep.subr.mxu0 0.0
  %465 = vmatpush1.msra.mxu0 0.0
  %466 = vmatprep.subr.mxu0 0.0
  %467 = vmatpush1.msra.mxu0 0.0
  %468 = vmatprep.subr.mxu0 0.0
  %469 = vmatpush1.msra.mxu0 0.0
  %470 = vmatprep.subr.mxu0 0.0
  %471 = vmatpush1.msra.mxu0 0.0
  %472 = vmatprep.subr.mxu0 0.0
  %473 = vmatpush1.msra.mxu0 0.0
  %474 = vmatprep.subr.mxu0 0.0
  %475 = vmatpush1.msra.mxu0 0.0
  %476 = vmatprep.subr.mxu0 0.0
  %477 = vmatpush1.msra.mxu0 0.0
  %478 = vmatprep.subr.mxu0 0.0
  %479 = vmatpush1.msra.mxu0 0.0
  %480 = vmatprep.subr.mxu0 0.0
  %481 = vmatpush1.msra.mxu0 0.0
  %482 = vmatprep.subr.mxu0 0.0
  %483 = vmatpush1.msra.mxu0 0.0
  %484 = vmatprep.subr.mxu0 0.0
  %485 = vmatpush1.msra.mxu0 0.0
  %486 = vmatprep.subr.mxu0 0.0
  %487 = vmatpush1.msra.mxu0 0.0
  %488 = vmatprep.subr.mxu0 0.0
  %489 = vmatpush1.msra.mxu0 0.0
  %490 = vmatprep.subr.mxu0 0.0
  %491 = vmatpush1.msra.mxu0 0.0
  %492 = vmatprep.subr.mxu0 0.0
  %493 = vmatpush1.msra.mxu0 0.0
  %494 = vmatprep.subr.mxu0 0.0
  %495 = vmatpush1.msra.mxu0 0.0
  %496 = vmatprep.subr.mxu0 0.0
  %497 = vmatpush1.msra.mxu0 0.0
  %498 = vmatprep.subr.mxu0 0.0
  %499 = vmatpush1.msra.mxu0 0.0
  %500 = vmatprep.subr.mxu0 0.0
  %501 = vmatpush1.msra.mxu0 0.0
  %502 = vmatprep.mubr.f32.mxu0 0.0
  %503 = vmatmul.mubr.f32.gmra.mrb[0].mxu0 %v436
  %v504 = vpop.f32.mrb[0].mxu0
  %v505 = vadd.f32 0.0, %v504
  %v506 = vpop.f32.mrb[0].mxu0
  %507 = vdwg.mxu0
  %v509 = vrot.slane %v505, 4
  %v511 = vadd.f32 %v210, %v509
  %v512 = vtanh.pop %v511
  %v513 = vxor.u32 %v511, 2147483648
  %v514 = vmul.f32 %v513, 1.442695
  %v515 = vpow.pop %v514
  %v516 = vadd.f32 %v515, 1.0
  %v517 = vrcp.pop %v516
  %v518 = vmul.f32 1.0, %v517
  %v519 = vsel %vm124, %v512, %v518
  %v521 = vrot.slane %v420, 6
  %v523 = vmul.f32 %v519, %v521
  %525 = vrot.lane.b32.xlu0 %v519, 64
  %v526 = vpop.permute.xlu0 %525
  %v528 = vmul.f32 %v519, %v526
  %530 = vrot.lane.b32.xlu0 %v528, 32
  %v531 = vpop.permute.xlu0 %530
  %v533 = vadd.f32 %v523, %v531
  %v534 = vtanh.pop %v533
  %536 = vrot.lane.b32.xlu0 %v534, 64
  %v537 = vpop.permute.xlu0 %536
  %v539 = vmul.f32 %v519, %v537
  %541 = vrot.lane.b32.xlu0 %v539, 32
  %v542 = vpop.permute.xlu0 %541
  %vm544 = vcmask 259076
  %545 = vst.msk [vmem:[#allocation2] sm:$0x30] %vm544, %v542
  %v546 = vrot.slane %v539, 4
  %547 = vrot.lane.b32.xlu0 %v546, 32
  %v548 = vpop.permute.xlu0 %547
  %v549 = vsel %vm40, %v548, 0
  %551 = vmatprep.subr.mxu0 0.0
  %552 = vmatpush1.msra.mxu0 %v127
  %553 = vmatprep.subr.mxu0 0.0
  %554 = vmatpush1.msra.mxu0 %v128
  %555 = vmatprep.subr.mxu0 0.0
  %556 = vmatpush1.msra.mxu0 %v129
  %557 = vmatprep.subr.mxu0 0.0
  %558 = vmatpush1.msra.mxu0 %v130
  %559 = vmatprep.subr.mxu0 0.0
  %560 = vmatpush1.msra.mxu0 0.0
  %561 = vmatprep.subr.mxu0 0.0
  %562 = vmatpush1.msra.mxu0 0.0
  %563 = vmatprep.subr.mxu0 0.0
  %564 = vmatpush1.msra.mxu0 0.0
  %565 = vmatprep.subr.mxu0 0.0
  %566 = vmatpush1.msra.mxu0 0.0
  %567 = vmatprep.subr.mxu0 0.0
  %568 = vmatpush1.msra.mxu0 0.0
  %569 = vmatprep.subr.mxu0 0.0
  %570 = vmatpush1.msra.mxu0 0.0
  %571 = vmatprep.subr.mxu0 0.0
  %572 = vmatpush1.msra.mxu0 0.0
  %573 = vmatprep.subr.mxu0 0.0
  %574 = vmatpush1.msra.mxu0 0.0
  %575 = vmatprep.subr.mxu0 0.0
  %576 = vmatpush1.msra.mxu0 0.0
  %577 = vmatprep.subr.mxu0 0.0
  %578 = vmatpush1.msra.mxu0 0.0
  %579 = vmatprep.subr.mxu0 0.0
  %580 = vmatpush1.msra.mxu0 0.0
  %581 = vmatprep.subr.mxu0 0.0
  %582 = vmatpush1.msra.mxu0 0.0
  %583 = vmatprep.subr.mxu0 0.0
  %584 = vmatpush1.msra.mxu0 0.0
  %585 = vmatprep.subr.mxu0 0.0
  %586 = vmatpush1.msra.mxu0 0.0
  %587 = vmatprep.subr.mxu0 0.0
  %588 = vmatpush1.msra.mxu0 0.0
  %589 = vmatprep.subr.mxu0 0.0
  %590 = vmatpush1.msra.mxu0 0.0
  %591 = vmatprep.subr.mxu0 0.0
  %592 = vmatpush1.msra.mxu0 0.0
  %593 = vmatprep.subr.mxu0 0.0
  %594 = vmatpush1.msra.mxu0 0.0
  %595 = vmatprep.subr.mxu0 0.0
  %596 = vmatpush1.msra.mxu0 0.0
  %597 = vmatprep.subr.mxu0 0.0
  %598 = vmatpush1.msra.mxu0 0.0
  %599 = vmatprep.subr.mxu0 0.0
  %600 = vmatpush1.msra.mxu0 0.0
  %601 = vmatprep.subr.mxu0 0.0
  %602 = vmatpush1.msra.mxu0 0.0
  %603 = vmatprep.subr.mxu0 0.0
  %604 = vmatpush1.msra.mxu0 0.0
  %605 = vmatprep.subr.mxu0 0.0
  %606 = vmatpush1.msra.mxu0 0.0
  %607 = vmatprep.subr.mxu0 0.0
  %608 = vmatpush1.msra.mxu0 0.0
  %609 = vmatprep.subr.mxu0 0.0
  %610 = vmatpush1.msra.mxu0 0.0
  %611 = vmatprep.subr.mxu0 0.0
  %612 = vmatpush1.msra.mxu0 0.0
  %613 = vmatprep.subr.mxu0 0.0
  %614 = vmatpush1.msra.mxu0 0.0
  %615 = vmatprep.mubr.f32.mxu0 0.0
  %616 = vmatmul.mubr.f32.gmra.mrb[0].mxu0 %v549
  %v617 = vpop.f32.mrb[0].mxu0
  %v618 = vadd.f32 0.0, %v617
  %v619 = vpop.f32.mrb[0].mxu0
  %620 = vdwg.mxu0
  %v622 = vrot.slane %v618, 2
  %v624 = vadd.f32 %v210, %v622
  %v625 = vtanh.pop %v624
  %v626 = vxor.u32 %v624, 2147483648
  %v627 = vmul.f32 %v626, 1.442695
  %v628 = vpow.pop %v627
  %v629 = vadd.f32 %v628, 1.0
  %v630 = vrcp.pop %v629
  %v631 = vmul.f32 1.0, %v630
  %v632 = vsel %vm124, %v625, %v631
  %v634 = vrot.slane %v533, 6
  %v636 = vmul.f32 %v632, %v634
  %638 = vrot.lane.b32.xlu0 %v632, 64
  %v639 = vpop.permute.xlu0 %638
  %v641 = vmul.f32 %v632, %v639
  %643 = vrot.lane.b32.xlu0 %v641, 32
  %v644 = vpop.permute.xlu0 %643
  %v646 = vadd.f32 %v636, %v644
  %v647 = vtanh.pop %v646
  %649 = vrot.lane.b32.xlu0 %v647, 64
  %v650 = vpop.permute.xlu0 %649
  %v652 = vmul.f32 %v632, %v650
  %654 = vrot.lane.b32.xlu0 %v652, 32
  %v655 = vpop.permute.xlu0 %654
  %vm657 = vcmask 261126
  %658 = vst.msk [vmem:[#allocation2] sm:$0xc0] %vm657, %v655
  %v659 = vrot.slane %v652, 6
  %660 = vrot.lane.b32.xlu0 %v659, 32
  %v661 = vpop.permute.xlu0 %660
  %v662 = vsel %vm40, %v661, 0
  %664 = vmatprep.subr.mxu0 0.0
  %665 = vmatpush1.msra.mxu0 %v127
  %666 = vmatprep.subr.mxu0 0.0
  %667 = vmatpush1.msra.mxu0 %v128
  %668 = vmatprep.subr.mxu0 0.0
  %669 = vmatpush1.msra.mxu0 %v129
  %670 = vmatprep.subr.mxu0 0.0
  %671 = vmatpush1.msra.mxu0 %v130
  %672 = vmatprep.subr.mxu0 0.0
  %673 = vmatpush1.msra.mxu0 0.0
  %674 = vmatprep.subr.mxu0 0.0
  %675 = vmatpush1.msra.mxu0 0.0
  %676 = vmatprep.subr.mxu0 0.0
  %677 = vmatpush1.msra.mxu0 0.0
  %678 = vmatprep.subr.mxu0 0.0
  %679 = vmatpush1.msra.mxu0 0.0
  %680 = vmatprep.subr.mxu0 0.0
  %681 = vmatpush1.msra.mxu0 0.0
  %682 = vmatprep.subr.mxu0 0.0
  %683 = vmatpush1.msra.mxu0 0.0
  %684 = vmatprep.subr.mxu0 0.0
  %685 = vmatpush1.msra.mxu0 0.0
  %686 = vmatprep.subr.mxu0 0.0
  %687 = vmatpush1.msra.mxu0 0.0
  %688 = vmatprep.subr.mxu0 0.0
  %689 = vmatpush1.msra.mxu0 0.0
  %690 = vmatprep.subr.mxu0 0.0
  %691 = vmatpush1.msra.mxu0 0.0
  %692 = vmatprep.subr.mxu0 0.0
  %693 = vmatpush1.msra.mxu0 0.0
  %694 = vmatprep.subr.mxu0 0.0
  %695 = vmatpush1.msra.mxu0 0.0
  %696 = vmatprep.subr.mxu0 0.0
  %697 = vmatpush1.msra.mxu0 0.0
  %698 = vmatprep.subr.mxu0 0.0
  %699 = vmatpush1.msra.mxu0 0.0
  %700 = vmatprep.subr.mxu0 0.0
  %701 = vmatpush1.msra.mxu0 0.0
  %702 = vmatprep.subr.mxu0 0.0
  %703 = vmatpush1.msra.mxu0 0.0
  %704 = vmatprep.subr.mxu0 0.0
  %705 = vmatpush1.msra.mxu0 0.0
  %706 = vmatprep.subr.mxu0 0.0
  %707 = vmatpush1.msra.mxu0 0.0
  %708 = vmatprep.subr.mxu0 0.0
  %709 = vmatpush1.msra.mxu0 0.0
  %710 = vmatprep.subr.mxu0 0.0
  %711 = vmatpush1.msra.mxu0 0.0
  %712 = vmatprep.subr.mxu0 0.0
  %713 = vmatpush1.msra.mxu0 0.0
  %714 = vmatprep.subr.mxu0 0.0
  %715 = vmatpush1.msra.mxu0 0.0
  %716 = vmatprep.subr.mxu0 0.0
  %717 = vmatpush1.msra.mxu0 0.0
  %718 = vmatprep.subr.mxu0 0.0
  %719 = vmatpush1.msra.mxu0 0.0
  %720 = vmatprep.subr.mxu0 0.0
  %721 = vmatpush1.msra.mxu0 0.0
  %722 = vmatprep.subr.mxu0 0.0
  %723 = vmatpush1.msra.mxu0 0.0
  %724 = vmatprep.subr.mxu0 0.0
  %725 = vmatpush1.msra.mxu0 0.0
  %726 = vmatprep.subr.mxu0 0.0
  %727 = vmatpush1.msra.mxu0 0.0
  %728 = vmatprep.mubr.f32.mxu0 0.0
  %729 = vmatmul.mubr.f32.gmra.mrb[0].mxu0 %v662
  %v730 = vpop.f32.mrb[0].mxu0
  %v731 = vadd.f32 0.0, %v730
  %v732 = vpop.f32.mrb[0].mxu0
  %733 = vdwg.mxu0
  %v734 = vadd.f32 %v215, %v731
  %v735 = vtanh.pop %v734
  %v736 = vxor.u32 %v734, 2147483648
  %v737 = vmul.f32 %v736, 1.442695
  %v738 = vpow.pop %v737
  %v739 = vadd.f32 %v738, 1.0
  %v740 = vrcp.pop %v739
  %v741 = vmul.f32 1.0, %v740
  %v742 = vsel %vm124, %v735, %v741
  %v744 = vrot.slane %v646, 6
  %v746 = vmul.f32 %v742, %v744
  %748 = vrot.lane.b32.xlu0 %v742, 64
  %v749 = vpop.permute.xlu0 %748
  %v751 = vmul.f32 %v742, %v749
  %753 = vrot.lane.b32.xlu0 %v751, 32
  %v754 = vpop.permute.xlu0 %753
  %v756 = vadd.f32 %v746, %v754
  %v757 = vtanh.pop %v756
  %759 = vrot.lane.b32.xlu0 %v757, 64
  %v760 = vpop.permute.xlu0 %759
  %v762 = vmul.f32 %v742, %v760
  %764 = vrot.lane.b32.xlu0 %v762, 32
  %v765 = vpop.permute.xlu0 %764
  %767 = vst.msk [vmem:[#allocation2 + $0x8] sm:$0x3] %vm321, %v765
  %v768 = vsel %vm40, %v765, 0
  %770 = vmatprep.subr.mxu0 0.0
  %771 = vmatpush1.msra.mxu0 %v127
  %772 = vmatprep.subr.mxu0 0.0
  %773 = vmatpush1.msra.mxu0 %v128
  %774 = vmatprep.subr.mxu0 0.0
  %775 = vmatpush1.msra.mxu0 %v129
  %776 = vmatprep.subr.mxu0 0.0
  %777 = vmatpush1.msra.mxu0 %v130
  %778 = vmatprep.subr.mxu0 0.0
  %779 = vmatpush1.msra.mxu0 0.0
  %780 = vmatprep.subr.mxu0 0.0
  %781 = vmatpush1.msra.mxu0 0.0
  %782 = vmatprep.subr.mxu0 0.0
  %783 = vmatpush1.msra.mxu0 0.0
  %784 = vmatprep.subr.mxu0 0.0
  %785 = vmatpush1.msra.mxu0 0.0
  %786 = vmatprep.subr.mxu0 0.0
  %787 = vmatpush1.msra.mxu0 0.0
  %788 = vmatprep.subr.mxu0 0.0
  %789 = vmatpush1.msra.mxu0 0.0
  %790 = vmatprep.subr.mxu0 0.0
  %791 = vmatpush1.msra.mxu0 0.0
  %792 = vmatprep.subr.mxu0 0.0
  %793 = vmatpush1.msra.mxu0 0.0
  %794 = vmatprep.subr.mxu0 0.0
  %795 = vmatpush1.msra.mxu0 0.0
  %796 = vmatprep.subr.mxu0 0.0
  %797 = vmatpush1.msra.mxu0 0.0
  %798 = vmatprep.subr.mxu0 0.0
  %799 = vmatpush1.msra.mxu0 0.0
  %800 = vmatprep.subr.mxu0 0.0
  %801 = vmatpush1.msra.mxu0 0.0
  %802 = vmatprep.subr.mxu0 0.0
  %803 = vmatpush1.msra.mxu0 0.0
  %804 = vmatprep.subr.mxu0 0.0
  %805 = vmatpush1.msra.mxu0 0.0
  %806 = vmatprep.subr.mxu0 0.0
  %807 = vmatpush1.msra.mxu0 0.0
  %808 = vmatprep.subr.mxu0 0.0
  %809 = vmatpush1.msra.mxu0 0.0
  %810 = vmatprep.subr.mxu0 0.0
  %811 = vmatpush1.msra.mxu0 0.0
  %812 = vmatprep.subr.mxu0 0.0
  %813 = vmatpush1.msra.mxu0 0.0
  %814 = vmatprep.subr.mxu0 0.0
  %815 = vmatpush1.msra.mxu0 0.0
  %816 = vmatprep.subr.mxu0 0.0
  %817 = vmatpush1.msra.mxu0 0.0
  %818 = vmatprep.subr.mxu0 0.0
  %819 = vmatpush1.msra.mxu0 0.0
  %820 = vmatprep.subr.mxu0 0.0
  %821 = vmatpush1.msra.mxu0 0.0
  %822 = vmatprep.subr.mxu0 0.0
  %823 = vmatpush1.msra.mxu0 0.0
  %824 = vmatprep.subr.mxu0 0.0
  %825 = vmatpush1.msra.mxu0 0.0
  %826 = vmatprep.subr.mxu0 0.0
  %827 = vmatpush1.msra.mxu0 0.0
  %828 = vmatprep.subr.mxu0 0.0
  %829 = vmatpush1.msra.mxu0 0.0
  %830 = vmatprep.subr.mxu0 0.0
  %831 = vmatpush1.msra.mxu0 0.0
  %832 = vmatprep.subr.mxu0 0.0
  %833 = vmatpush1.msra.mxu0 0.0
  %834 = vmatprep.mubr.f32.mxu0 0.0
  %835 = vmatmul.mubr.f32.gmra.mrb[0].mxu0 %v768
  %v836 = vpop.f32.mrb[0].mxu0
  %v837 = vadd.f32 0.0, %v836
  %v838 = vpop.f32.mrb[0].mxu0
  %839 = vdwg.mxu0
  %v841 = vrot.slane %v837, 6
  %v843 = vadd.f32 %v215, %v841
  %v844 = vtanh.pop %v843
  %v845 = vxor.u32 %v843, 2147483648
  %v846 = vmul.f32 %v845, 1.442695
  %v847 = vpow.pop %v846
  %v848 = vadd.f32 %v847, 1.0
  %v849 = vrcp.pop %v848
  %v850 = vmul.f32 1.0, %v849
  %v851 = vsel %vm124, %v844, %v850
  %v853 = vrot.slane %v756, 6
  %v855 = vmul.f32 %v851, %v853
  %857 = vrot.lane.b32.xlu0 %v851, 64
  %v858 = vpop.permute.xlu0 %857
  %v860 = vmul.f32 %v851, %v858
  %862 = vrot.lane.b32.xlu0 %v860, 32
  %v863 = vpop.permute.xlu0 %862
  %v865 = vadd.f32 %v855, %v863
  %v866 = vtanh.pop %v865
  %868 = vrot.lane.b32.xlu0 %v866, 64
  %v869 = vpop.permute.xlu0 %868
  %v871 = vmul.f32 %v851, %v869
  %873 = vrot.lane.b32.xlu0 %v871, 32
  %v874 = vpop.permute.xlu0 %873
  %876 = vst.msk [vmem:[#allocation2 + $0x8] sm:$0xc] %vm431, %v874
  %v877 = vrot.slane %v871, 2
  %878 = vrot.lane.b32.xlu0 %v877, 32
  %v879 = vpop.permute.xlu0 %878
  %v880 = vsel %vm40, %v879, 0
  %882 = vmatprep.subr.mxu0 0.0
  %883 = vmatpush1.msra.mxu0 %v127
  %884 = vmatprep.subr.mxu0 0.0
  %885 = vmatpush1.msra.mxu0 %v128
  %886 = vmatprep.subr.mxu0 0.0
  %887 = vmatpush1.msra.mxu0 %v129
  %888 = vmatprep.subr.mxu0 0.0
  %889 = vmatpush1.msra.mxu0 %v130
  %890 = vmatprep.subr.mxu0 0.0
  %891 = vmatpush1.msra.mxu0 0.0
  %892 = vmatprep.subr.mxu0 0.0
  %893 = vmatpush1.msra.mxu0 0.0
  %894 = vmatprep.subr.mxu0 0.0
  %895 = vmatpush1.msra.mxu0 0.0
  %896 = vmatprep.subr.mxu0 0.0
  %897 = vmatpush1.msra.mxu0 0.0
  %898 = vmatprep.subr.mxu0 0.0
  %899 = vmatpush1.msra.mxu0 0.0
  %900 = vmatprep.subr.mxu0 0.0
  %901 = vmatpush1.msra.mxu0 0.0
  %902 = vmatprep.subr.mxu0 0.0
  %903 = vmatpush1.msra.mxu0 0.0
  %904 = vmatprep.subr.mxu0 0.0
  %905 = vmatpush1.msra.mxu0 0.0
  %906 = vmatprep.subr.mxu0 0.0
  %907 = vmatpush1.msra.mxu0 0.0
  %908 = vmatprep.subr.mxu0 0.0
  %909 = vmatpush1.msra.mxu0 0.0
  %910 = vmatprep.subr.mxu0 0.0
  %911 = vmatpush1.msra.mxu0 0.0
  %912 = vmatprep.subr.mxu0 0.0
  %913 = vmatpush1.msra.mxu0 0.0
  %914 = vmatprep.subr.mxu0 0.0
  %915 = vmatpush1.msra.mxu0 0.0
  %916 = vmatprep.subr.mxu0 0.0
  %917 = vmatpush1.msra.mxu0 0.0
  %918 = vmatprep.subr.mxu0 0.0
  %919 = vmatpush1.msra.mxu0 0.0
  %920 = vmatprep.subr.mxu0 0.0
  %921 = vmatpush1.msra.mxu0 0.0
  %922 = vmatprep.subr.mxu0 0.0
  %923 = vmatpush1.msra.mxu0 0.0
  %924 = vmatprep.subr.mxu0 0.0
  %925 = vmatpush1.msra.mxu0 0.0
  %926 = vmatprep.subr.mxu0 0.0
  %927 = vmatpush1.msra.mxu0 0.0
  %928 = vmatprep.subr.mxu0 0.0
  %929 = vmatpush1.msra.mxu0 0.0
  %930 = vmatprep.subr.mxu0 0.0
  %931 = vmatpush1.msra.mxu0 0.0
  %932 = vmatprep.subr.mxu0 0.0
  %933 = vmatpush1.msra.mxu0 0.0
  %934 = vmatprep.subr.mxu0 0.0
  %935 = vmatpush1.msra.mxu0 0.0
  %936 = vmatprep.subr.mxu0 0.0
  %937 = vmatpush1.msra.mxu0 0.0
  %938 = vmatprep.subr.mxu0 0.0
  %939 = vmatpush1.msra.mxu0 0.0
  %940 = vmatprep.subr.mxu0 0.0
  %941 = vmatpush1.msra.mxu0 0.0
  %942 = vmatprep.subr.mxu0 0.0
  %943 = vmatpush1.msra.mxu0 0.0
  %944 = vmatprep.subr.mxu0 0.0
  %945 = vmatpush1.msra.mxu0 0.0
  %946 = vmatprep.mubr.f32.mxu0 0.0
  %947 = vmatmul.mubr.f32.gmra.mrb[0].mxu0 %v880
  %v948 = vpop.f32.mrb[0].mxu0
  %v949 = vadd.f32 0.0, %v948
  %v950 = vpop.f32.mrb[0].mxu0
  %951 = vdwg.mxu0
  %v953 = vrot.slane %v949, 4
  %v955 = vadd.f32 %v215, %v953
  %v956 = vtanh.pop %v955
  %v957 = vxor.u32 %v955, 2147483648
  %v958 = vmul.f32 %v957, 1.442695
  %v959 = vpow.pop %v958
  %v960 = vadd.f32 %v959, 1.0
  %v961 = vrcp.pop %v960
  %v962 = vmul.f32 1.0, %v961
  %v963 = vsel %vm124, %v956, %v962
  %v965 = vrot.slane %v865, 6
  %v967 = vmul.f32 %v963, %v965
  %969 = vrot.lane.b32.xlu0 %v963, 64
  %v970 = vpop.permute.xlu0 %969
  %v972 = vmul.f32 %v963, %v970
  %974 = vrot.lane.b32.xlu0 %v972, 32
  %v975 = vpop.permute.xlu0 %974
  %v977 = vadd.f32 %v967, %v975
  %v978 = vtanh.pop %v977
  %980 = vrot.lane.b32.xlu0 %v978, 64
  %v981 = vpop.permute.xlu0 %980
  %v983 = vmul.f32 %v963, %v981
  %985 = vrot.lane.b32.xlu0 %v983, 32
  %v986 = vpop.permute.xlu0 %985
  %988 = vst.msk [vmem:[#allocation2 + $0x8] sm:$0x30] %vm544, %v986
  %v989 = vrot.slane %v983, 4
  %990 = vrot.lane.b32.xlu0 %v989, 32
  %v991 = vpop.permute.xlu0 %990
  %v992 = vsel %vm40, %v991, 0
  %994 = vmatprep.subr.mxu0 0.0
  %995 = vmatpush1.msra.mxu0 %v127
  %996 = vmatprep.subr.mxu0 0.0
  %997 = vmatpush1.msra.mxu0 %v128
  %998 = vmatprep.subr.mxu0 0.0
  %999 = vmatpush1.msra.mxu0 %v129
  %1000 = vmatprep.subr.mxu0 0.0
  %1001 = vmatpush1.msra.mxu0 %v130
  %1002 = vmatprep.subr.mxu0 0.0
  %1003 = vmatpush1.msra.mxu0 0.0
  %1004 = vmatprep.subr.mxu0 0.0
  %1005 = vmatpush1.msra.mxu0 0.0
  %1006 = vmatprep.subr.mxu0 0.0
  %1007 = vmatpush1.msra.mxu0 0.0
  %1008 = vmatprep.subr.mxu0 0.0
  %1009 = vmatpush1.msra.mxu0 0.0
  %1010 = vmatprep.subr.mxu0 0.0
  %1011 = vmatpush1.msra.mxu0 0.0
  %1012 = vmatprep.subr.mxu0 0.0
  %1013 = vmatpush1.msra.mxu0 0.0
  %1014 = vmatprep.subr.mxu0 0.0
  %1015 = vmatpush1.msra.mxu0 0.0
  %1016 = vmatprep.subr.mxu0 0.0
  %1017 = vmatpush1.msra.mxu0 0.0
  %1018 = vmatprep.subr.mxu0 0.0
  %1019 = vmatpush1.msra.mxu0 0.0
  %1020 = vmatprep.subr.mxu0 0.0
  %1021 = vmatpush1.msra.mxu0 0.0
  %1022 = vmatprep.subr.mxu0 0.0
  %1023 = vmatpush1.msra.mxu0 0.0
  %1024 = vmatprep.subr.mxu0 0.0
  %1025 = vmatpush1.msra.mxu0 0.0
  %1026 = vmatprep.subr.mxu0 0.0
  %1027 = vmatpush1.msra.mxu0 0.0
  %1028 = vmatprep.subr.mxu0 0.0
  %1029 = vmatpush1.msra.mxu0 0.0
  %1030 = vmatprep.subr.mxu0 0.0
  %1031 = vmatpush1.msra.mxu0 0.0
  %1032 = vmatprep.subr.mxu0 0.0
  %1033 = vmatpush1.msra.mxu0 0.0
  %1034 = vmatprep.subr.mxu0 0.0
  %1035 = vmatpush1.msra.mxu0 0.0
  %1036 = vmatprep.subr.mxu0 0.0
  %1037 = vmatpush1.msra.mxu0 0.0
  %1038 = vmatprep.subr.mxu0 0.0
  %1039 = vmatpush1.msra.mxu0 0.0
  %1040 = vmatprep.subr.mxu0 0.0
  %1041 = vmatpush1.msra.mxu0 0.0
  %1042 = vmatprep.subr.mxu0 0.0
  %1043 = vmatpush1.msra.mxu0 0.0
  %1044 = vmatprep.subr.mxu0 0.0
  %1045 = vmatpush1.msra.mxu0 0.0
  %1046 = vmatprep.subr.mxu0 0.0
  %1047 = vmatpush1.msra.mxu0 0.0
  %1048 = vmatprep.subr.mxu0 0.0
  %1049 = vmatpush1.msra.mxu0 0.0
  %1050 = vmatprep.subr.mxu0 0.0
  %1051 = vmatpush1.msra.mxu0 0.0
  %1052 = vmatprep.subr.mxu0 0.0
  %1053 = vmatpush1.msra.mxu0 0.0
  %1054 = vmatprep.subr.mxu0 0.0
  %1055 = vmatpush1.msra.mxu0 0.0
  %1056 = vmatprep.subr.mxu0 0.0
  %1057 = vmatpush1.msra.mxu0 0.0
  %1058 = vmatprep.mubr.f32.mxu0 0.0
  %1059 = vmatmul.mubr.f32.gmra.mrb[0].mxu0 %v992
  %v1060 = vpop.f32.mrb[0].mxu0
  %v1061 = vadd.f32 0.0, %v1060
  %v1062 = vpop.f32.mrb[0].mxu0
  %1063 = vdwg.mxu0
  %v1065 = vrot.slane %v1061, 2
  %v1067 = vadd.f32 %v215, %v1065
  %v1068 = vtanh.pop %v1067
  %v1069 = vxor.u32 %v1067, 2147483648
  %v1070 = vmul.f32 %v1069, 1.442695
  %v1071 = vpow.pop %v1070
  %v1072 = vadd.f32 %v1071, 1.0
  %v1073 = vrcp.pop %v1072
  %v1074 = vmul.f32 1.0, %v1073
  %v1075 = vsel %vm124, %v1068, %v1074
  %v1077 = vrot.slane %v977, 6
  %v1079 = vmul.f32 %v1075, %v1077
  %1081 = vrot.lane.b32.xlu0 %v1075, 64
  %v1082 = vpop.permute.xlu0 %1081
  %v1084 = vmul.f32 %v1075, %v1082
  %1086 = vrot.lane.b32.xlu0 %v1084, 32
  %v1087 = vpop.permute.xlu0 %1086
  %v1089 = vadd.f32 %v1079, %v1087
  %v1090 = vtanh.pop %v1089
  %1092 = vrot.lane.b32.xlu0 %v1090, 64
  %v1093 = vpop.permute.xlu0 %1092
  %v1095 = vmul.f32 %v1075, %v1093
  %1097 = vrot.lane.b32.xlu0 %v1095, 32
  %v1098 = vpop.permute.xlu0 %1097
  %1100 = vst.msk [vmem:[#allocation2 + $0x8] sm:$0xc0] %vm657, %v1098
  %v1101 = vld [vmem:[#allocation2] sm:$0xff]
  %v1102 = vld [vmem:[#allocation2 + $0x8] sm:$0xff]
  %v1103 = vld [vmem:[%s3] sm:$0xff]
  %v1104 = vld [vmem:[%s3 + $0x8] sm:$0xff]
  %v1105 = vld [vmem:[%s3 + $0x10] sm:$0xff]
  %v1106 = vld [vmem:[%s3 + $0x18] sm:$0xff]
  %v1107 = vld [vmem:[%s3 + $0x20] sm:$0xff]
  %v1108 = vld [vmem:[%s3 + $0x28] sm:$0xff]
  %v1109 = vld [vmem:[%s3 + $0x30] sm:$0xff]
  %v1110 = vld [vmem:[%s3 + $0x38] sm:$0xff]
  %v1111 = vld [vmem:[%s3 + $0x40] sm:$0x1]
  %v1112 = vlaneseq
  %v1113 = vshrl.u32 %v1112, 7
  %v1114 = vsub.s32 0, %v1113
  %v1115 = vrot.slane %v1111, %v1114
  %v1117 = vsel %vm40, %v1101, 0
  %v1120 = vsel %vm40, %v1102, 0
  %1122 = vmatprep.subr.mxu0 0.0
  %1123 = vmatpush1.msra.mxu0 %v1103
  %1124 = vmatprep.subr.mxu0 0.0
  %1125 = vmatpush1.msra.mxu0 %v1104
  %1126 = vmatprep.subr.mxu0 0.0
  %1127 = vmatpush1.msra.mxu0 %v1105
  %1128 = vmatprep.subr.mxu0 0.0
  %1129 = vmatpush1.msra.mxu0 %v1106
  %1130 = vmatprep.subr.mxu0 0.0
  %1131 = vmatpush1.msra.mxu0 0.0
  %1132 = vmatprep.subr.mxu0 0.0
  %1133 = vmatpush1.msra.mxu0 0.0
  %1134 = vmatprep.subr.mxu0 0.0
  %1135 = vmatpush1.msra.mxu0 0.0
  %1136 = vmatprep.subr.mxu0 0.0
  %1137 = vmatpush1.msra.mxu0 0.0
  %1138 = vmatprep.subr.mxu0 0.0
  %1139 = vmatpush1.msra.mxu0 0.0
  %1140 = vmatprep.subr.mxu0 0.0
  %1141 = vmatpush1.msra.mxu0 0.0
  %1142 = vmatprep.subr.mxu0 0.0
  %1143 = vmatpush1.msra.mxu0 0.0
  %1144 = vmatprep.subr.mxu0 0.0
  %1145 = vmatpush1.msra.mxu0 0.0
  %1146 = vmatprep.subr.mxu0 0.0
  %1147 = vmatpush1.msra.mxu0 0.0
  %1148 = vmatprep.subr.mxu0 0.0
  %1149 = vmatpush1.msra.mxu0 0.0
  %1150 = vmatprep.subr.mxu0 0.0
  %1151 = vmatpush1.msra.mxu0 0.0
  %1152 = vmatprep.subr.mxu0 0.0
  %1153 = vmatpush1.msra.mxu0 0.0
  %1154 = vmatprep.subr.mxu0 0.0
  %1155 = vmatpush1.msra.mxu0 0.0
  %1156 = vmatprep.subr.mxu0 0.0
  %1157 = vmatpush1.msra.mxu0 0.0
  %1158 = vmatprep.subr.mxu0 0.0
  %1159 = vmatpush1.msra.mxu0 0.0
  %1160 = vmatprep.subr.mxu0 0.0
  %1161 = vmatpush1.msra.mxu0 0.0
  %1162 = vmatprep.subr.mxu0 0.0
  %1163 = vmatpush1.msra.mxu0 0.0
  %1164 = vmatprep.subr.mxu0 0.0
  %1165 = vmatpush1.msra.mxu0 0.0
  %1166 = vmatprep.subr.mxu0 0.0
  %1167 = vmatpush1.msra.mxu0 0.0
  %1168 = vmatprep.subr.mxu0 0.0
  %1169 = vmatpush1.msra.mxu0 0.0
  %1170 = vmatprep.subr.mxu0 0.0
  %1171 = vmatpush1.msra.mxu0 0.0
  %1172 = vmatprep.subr.mxu0 0.0
  %1173 = vmatpush1.msra.mxu0 0.0
  %1174 = vmatprep.subr.mxu0 0.0
  %1175 = vmatpush1.msra.mxu0 0.0
  %1176 = vmatprep.subr.mxu0 0.0
  %1177 = vmatpush1.msra.mxu0 0.0
  %1178 = vmatprep.subr.mxu0 0.0
  %1179 = vmatpush1.msra.mxu0 0.0
  %1180 = vmatprep.subr.mxu0 0.0
  %1181 = vmatpush1.msra.mxu0 0.0
  %1182 = vmatprep.subr.mxu0 0.0
  %1183 = vmatpush1.msra.mxu0 0.0
  %1184 = vmatprep.subr.mxu0 0.0
  %1185 = vmatpush1.msra.mxu0 0.0
  %1186 = vmatprep.mubr.f32.mxu0 0.0
  %1187 = vmatmul.mubr.f32.gmra.mrb[0].mxu0 %v1117
  %v1188 = vpop.f32.mrb[0].mxu0
  %v1189 = vadd.f32 %v1115, %v1188
  %v1190 = vpop.f32.mrb[0].mxu0
  %1191 = vmatprep.mubr.f32.mxu0 0.0
  %1192 = vmatmul.mubr.f32.gmra.mrb[0].mxu0 %v1120
  %v1193 = vpop.f32.mrb[0].mxu0
  %v1194 = vadd.f32 %v1115, %v1193
  %v1195 = vpop.f32.mrb[0].mxu0
  %1196 = vdwg.mxu0
  %1197 = vmatprep.subr.mxu0 0.0
  %1198 = vmatpush1.msra.mxu0 %v1107
  %1199 = vmatprep.subr.mxu0 0.0
  %1200 = vmatpush1.msra.mxu0 %v1108
  %1201 = vmatprep.subr.mxu0 0.0
  %1202 = vmatpush1.msra.mxu0 %v1109
  %1203 = vmatprep.subr.mxu0 0.0
  %1204 = vmatpush1.msra.mxu0 %v1110
  %1205 = vmatprep.subr.mxu0 0.0
  %1206 = vmatpush1.msra.mxu0 0.0
  %1207 = vmatprep.subr.mxu0 0.0
  %1208 = vmatpush1.msra.mxu0 0.0
  %1209 = vmatprep.subr.mxu0 0.0
  %1210 = vmatpush1.msra.mxu0 0.0
  %1211 = vmatprep.subr.mxu0 0.0
  %1212 = vmatpush1.msra.mxu0 0.0
  %1213 = vmatprep.subr.mxu0 0.0
  %1214 = vmatpush1.msra.mxu0 0.0
  %1215 = vmatprep.subr.mxu0 0.0
  %1216 = vmatpush1.msra.mxu0 0.0
  %1217 = vmatprep.subr.mxu0 0.0
  %1218 = vmatpush1.msra.mxu0 0.0
  %1219 = vmatprep.subr.mxu0 0.0
  %1220 = vmatpush1.msra.mxu0 0.0
  %1221 = vmatprep.subr.mxu0 0.0
  %1222 = vmatpush1.msra.mxu0 0.0
  %1223 = vmatprep.subr.mxu0 0.0
  %1224 = vmatpush1.msra.mxu0 0.0
  %1225 = vmatprep.subr.mxu0 0.0
  %1226 = vmatpush1.msra.mxu0 0.0
  %1227 = vmatprep.subr.mxu0 0.0
  %1228 = vmatpush1.msra.mxu0 0.0
  %1229 = vmatprep.subr.mxu0 0.0
  %1230 = vmatpush1.msra.mxu0 0.0
  %1231 = vmatprep.subr.mxu0 0.0
  %1232 = vmatpush1.msra.mxu0 0.0
  %1233 = vmatprep.subr.mxu0 0.0
  %1234 = vmatpush1.msra.mxu0 0.0
  %1235 = vmatprep.subr.mxu0 0.0
  %1236 = vmatpush1.msra.mxu0 0.0
  %1237 = vmatprep.subr.mxu0 0.0
  %1238 = vmatpush1.msra.mxu0 0.0
  %1239 = vmatprep.subr.mxu0 0.0
  %1240 = vmatpush1.msra.mxu0 0.0
  %1241 = vmatprep.subr.mxu0 0.0
  %1242 = vmatpush1.msra.mxu0 0.0
  %1243 = vmatprep.subr.mxu0 0.0
  %1244 = vmatpush1.msra.mxu0 0.0
  %1245 = vmatprep.subr.mxu0 0.0
  %1246 = vmatpush1.msra.mxu0 0.0
  %1247 = vmatprep.subr.mxu0 0.0
  %1248 = vmatpush1.msra.mxu0 0.0
  %1249 = vmatprep.subr.mxu0 0.0
  %1250 = vmatpush1.msra.mxu0 0.0
  %1251 = vmatprep.subr.mxu0 0.0
  %1252 = vmatpush1.msra.mxu0 0.0
  %1253 = vmatprep.subr.mxu0 0.0
  %1254 = vmatpush1.msra.mxu0 0.0
  %1255 = vmatprep.subr.mxu0 0.0
  %1256 = vmatpush1.msra.mxu0 0.0
  %1257 = vmatprep.subr.mxu0 0.0
  %1258 = vmatpush1.msra.mxu0 0.0
  %1259 = vmatprep.subr.mxu0 0.0
  %1260 = vmatpush1.msra.mxu0 0.0
  %1261 = vmatprep.mubr.f32.mxu0 0.0
  %1262 = vmatmul.mubr.f32.gmra.mrb[0].mxu0 %v219
  %v1263 = vpop.f32.mrb[0].mxu0
  %v1264 = vadd.f32 0.0, %v1263
  %v1265 = vpop.f32.mrb[0].mxu0
  %1266 = vdwg.mxu0
  %v1267 = vadd.f32 %v1189, %v1264
  %v1268 = vtanh.pop %v1267
  %v1269 = vxor.u32 %v1267, 2147483648
  %v1270 = vmul.f32 %v1269, 1.442695
  %v1271 = vpow.pop %v1270
  %v1272 = vadd.f32 %v1271, 1.0
  %v1273 = vrcp.pop %v1272
  %v1274 = vmul.f32 1.0, %v1273
  %v1275 = vsel %vm124, %v1268, %v1274
  %v1276 = vmul.f32 %v1275, 0.0
  %1278 = vrot.lane.b32.xlu0 %v1275, 64
  %v1279 = vpop.permute.xlu0 %1278
  %v1281 = vmul.f32 %v1275, %v1279
  %1283 = vrot.lane.b32.xlu0 %v1281, 32
  %v1284 = vpop.permute.xlu0 %1283
  %v1286 = vadd.f32 %v1276, %v1284
  %v1287 = vtanh.pop %v1286
  %1289 = vrot.lane.b32.xlu0 %v1287, 64
  %v1290 = vpop.permute.xlu0 %1289
  %v1292 = vmul.f32 %v1275, %v1290
  %1294 = vrot.lane.b32.xlu0 %v1292, 32
  %v1295 = vpop.permute.xlu0 %1294
  %1297 = vst.msk [vmem:[#allocation2] sm:$0x3] %vm321, %v1295
  %v1298 = vsel %vm40, %v1295, 0
  %1300 = vmatprep.subr.mxu0 0.0
  %1301 = vmatpush1.msra.mxu0 %v1107
  %1302 = vmatprep.subr.mxu0 0.0
  %1303 = vmatpush1.msra.mxu0 %v1108
  %1304 = vmatprep.subr.mxu0 0.0
  %1305 = vmatpush1.msra.mxu0 %v1109
  %1306 = vmatprep.subr.mxu0 0.0
  %1307 = vmatpush1.msra.mxu0 %v1110
  %1308 = vmatprep.subr.mxu0 0.0
  %1309 = vmatpush1.msra.mxu0 0.0
  %1310 = vmatprep.subr.mxu0 0.0
  %1311 = vmatpush1.msra.mxu0 0.0
  %1312 = vmatprep.subr.mxu0 0.0
  %1313 = vmatpush1.msra.mxu0 0.0
  %1314 = vmatprep.subr.mxu0 0.0
  %1315 = vmatpush1.msra.mxu0 0.0
  %1316 = vmatprep.subr.mxu0 0.0
  %1317 = vmatpush1.msra.mxu0 0.0
  %1318 = vmatprep.subr.mxu0 0.0
  %1319 = vmatpush1.msra.mxu0 0.0
  %1320 = vmatprep.subr.mxu0 0.0
  %1321 = vmatpush1.msra.mxu0 0.0
  %1322 = vmatprep.subr.mxu0 0.0
  %1323 = vmatpush1.msra.mxu0 0.0
  %1324 = vmatprep.subr.mxu0 0.0
  %1325 = vmatpush1.msra.mxu0 0.0
  %1326 = vmatprep.subr.mxu0 0.0
  %1327 = vmatpush1.msra.mxu0 0.0
  %1328 = vmatprep.subr.mxu0 0.0
  %1329 = vmatpush1.msra.mxu0 0.0
  %1330 = vmatprep.subr.mxu0 0.0
  %1331 = vmatpush1.msra.mxu0 0.0
  %1332 = vmatprep.subr.mxu0 0.0
  %1333 = vmatpush1.msra.mxu0 0.0
  %1334 = vmatprep.subr.mxu0 0.0
  %1335 = vmatpush1.msra.mxu0 0.0
  %1336 = vmatprep.subr.mxu0 0.0
  %1337 = vmatpush1.msra.mxu0 0.0
  %1338 = vmatprep.subr.mxu0 0.0
  %1339 = vmatpush1.msra.mxu0 0.0
  %1340 = vmatprep.subr.mxu0 0.0
  %1341 = vmatpush1.msra.mxu0 0.0
  %1342 = vmatprep.subr.mxu0 0.0
  %1343 = vmatpush1.msra.mxu0 0.0
  %1344 = vmatprep.subr.mxu0 0.0
  %1345 = vmatpush1.msra.mxu0 0.0
  %1346 = vmatprep.subr.mxu0 0.0
  %1347 = vmatpush1.msra.mxu0 0.0
  %1348 = vmatprep.subr.mxu0 0.0
  %1349 = vmatpush1.msra.mxu0 0.0
  %1350 = vmatprep.subr.mxu0 0.0
  %1351 = vmatpush1.msra.mxu0 0.0
  %1352 = vmatprep.subr.mxu0 0.0
  %1353 = vmatpush1.msra.mxu0 0.0
  %1354 = vmatprep.subr.mxu0 0.0
  %1355 = vmatpush1.msra.mxu0 0.0
  %1356 = vmatprep.subr.mxu0 0.0
  %1357 = vmatpush1.msra.mxu0 0.0
  %1358 = vmatprep.subr.mxu0 0.0
  %1359 = vmatpush1.msra.mxu0 0.0
  %1360 = vmatprep.subr.mxu0 0.0
  %1361 = vmatpush1.msra.mxu0 0.0
  %1362 = vmatprep.subr.mxu0 0.0
  %1363 = vmatpush1.msra.mxu0 0.0
  %1364 = vmatprep.mubr.f32.mxu0 0.0
  %1365 = vmatmul.mubr.f32.gmra.mrb[0].mxu0 %v1298
  %v1366 = vpop.f32.mrb[0].mxu0
  %v1367 = vadd.f32 0.0, %v1366
  %v1368 = vpop.f32.mrb[0].mxu0
  %1369 = vdwg.mxu0
  %v1371 = vrot.slane %v1367, 6
  %v1373 = vadd.f32 %v1189, %v1371
  %v1374 = vtanh.pop %v1373
  %v1375 = vxor.u32 %v1373, 2147483648
  %v1376 = vmul.f32 %v1375, 1.442695
  %v1377 = vpow.pop %v1376
  %v1378 = vadd.f32 %v1377, 1.0
  %v1379 = vrcp.pop %v1378
  %v1380 = vmul.f32 1.0, %v1379
  %v1381 = vsel %vm124, %v1374, %v1380
  %v1383 = vrot.slane %v1286, 6
  %v1385 = vmul.f32 %v1381, %v1383
  %1387 = vrot.lane.b32.xlu0 %v1381, 64
  %v1388 = vpop.permute.xlu0 %1387
  %v1390 = vmul.f32 %v1381, %v1388
  %1392 = vrot.lane.b32.xlu0 %v1390, 32
  %v1393 = vpop.permute.xlu0 %1392
  %v1395 = vadd.f32 %v1385, %v1393
  %v1396 = vtanh.pop %v1395
  %1398 = vrot.lane.b32.xlu0 %v1396, 64
  %v1399 = vpop.permute.xlu0 %1398
  %v1401 = vmul.f32 %v1381, %v1399
  %1403 = vrot.lane.b32.xlu0 %v1401, 32
  %v1404 = vpop.permute.xlu0 %1403
  %1406 = vst.msk [vmem:[#allocation2] sm:$0xc] %vm431, %v1404
  %v1407 = vrot.slane %v1401, 2
  %1408 = vrot.lane.b32.xlu0 %v1407, 32
  %v1409 = vpop.permute.xlu0 %1408
  %v1410 = vsel %vm40, %v1409, 0
  %1412 = vmatprep.subr.mxu0 0.0
  %1413 = vmatpush1.msra.mxu0 %v1107
  %1414 = vmatprep.subr.mxu0 0.0
  %1415 = vmatpush1.msra.mxu0 %v1108
  %1416 = vmatprep.subr.mxu0 0.0
  %1417 = vmatpush1.msra.mxu0 %v1109
  %1418 = vmatprep.subr.mxu0 0.0
  %1419 = vmatpush1.msra.mxu0 %v1110
  %1420 = vmatprep.subr.mxu0 0.0
  %1421 = vmatpush1.msra.mxu0 0.0
  %1422 = vmatprep.subr.mxu0 0.0
  %1423 = vmatpush1.msra.mxu0 0.0
  %1424 = vmatprep.subr.mxu0 0.0
  %1425 = vmatpush1.msra.mxu0 0.0
  %1426 = vmatprep.subr.mxu0 0.0
  %1427 = vmatpush1.msra.mxu0 0.0
  %1428 = vmatprep.subr.mxu0 0.0
  %1429 = vmatpush1.msra.mxu0 0.0
  %1430 = vmatprep.subr.mxu0 0.0
  %1431 = vmatpush1.msra.mxu0 0.0
  %1432 = vmatprep.subr.mxu0 0.0
  %1433 = vmatpush1.msra.mxu0 0.0
  %1434 = vmatprep.subr.mxu0 0.0
  %1435 = vmatpush1.msra.mxu0 0.0
  %1436 = vmatprep.subr.mxu0 0.0
  %1437 = vmatpush1.msra.mxu0 0.0
  %1438 = vmatprep.subr.mxu0 0.0
  %1439 = vmatpush1.msra.mxu0 0.0
  %1440 = vmatprep.subr.mxu0 0.0
  %1441 = vmatpush1.msra.mxu0 0.0
  %1442 = vmatprep.subr.mxu0 0.0
  %1443 = vmatpush1.msra.mxu0 0.0
  %1444 = vmatprep.subr.mxu0 0.0
  %1445 = vmatpush1.msra.mxu0 0.0
  %1446 = vmatprep.subr.mxu0 0.0
  %1447 = vmatpush1.msra.mxu0 0.0
  %1448 = vmatprep.subr.mxu0 0.0
  %1449 = vmatpush1.msra.mxu0 0.0
  %1450 = vmatprep.subr.mxu0 0.0
  %1451 = vmatpush1.msra.mxu0 0.0
  %1452 = vmatprep.subr.mxu0 0.0
  %1453 = vmatpush1.msra.mxu0 0.0
  %1454 = vmatprep.subr.mxu0 0.0
  %1455 = vmatpush1.msra.mxu0 0.0
  %1456 = vmatprep.subr.mxu0 0.0
  %1457 = vmatpush1.msra.mxu0 0.0
  %1458 = vmatprep.subr.mxu0 0.0
  %1459 = vmatpush1.msra.mxu0 0.0
  %1460 = vmatprep.subr.mxu0 0.0
  %1461 = vmatpush1.msra.mxu0 0.0
  %1462 = vmatprep.subr.mxu0 0.0
  %1463 = vmatpush1.msra.mxu0 0.0
  %1464 = vmatprep.subr.mxu0 0.0
  %1465 = vmatpush1.msra.mxu0 0.0
  %1466 = vmatprep.subr.mxu0 0.0
  %1467 = vmatpush1.msra.mxu0 0.0
  %1468 = vmatprep.subr.mxu0 0.0
  %1469 = vmatpush1.msra.mxu0 0.0
  %1470 = vmatprep.subr.mxu0 0.0
  %1471 = vmatpush1.msra.mxu0 0.0
  %1472 = vmatprep.subr.mxu0 0.0
  %1473 = vmatpush1.msra.mxu0 0.0
  %1474 = vmatprep.subr.mxu0 0.0
  %1475 = vmatpush1.msra.mxu0 0.0
  %1476 = vmatprep.mubr.f32.mxu0 0.0
  %1477 = vmatmul.mubr.f32.gmra.mrb[0].mxu0 %v1410
  %v1478 = vpop.f32.mrb[0].mxu0
  %v1479 = vadd.f32 0.0, %v1478
  %v1480 = vpop.f32.mrb[0].mxu0
  %1481 = vdwg.mxu0
  %v1483 = vrot.slane %v1479, 4
  %v1485 = vadd.f32 %v1189, %v1483
  %v1486 = vtanh.pop %v1485
  %v1487 = vxor.u32 %v1485, 2147483648
  %v1488 = vmul.f32 %v1487, 1.442695
  %v1489 = vpow.pop %v1488
  %v1490 = vadd.f32 %v1489, 1.0
  %v1491 = vrcp.pop %v1490
  %v1492 = vmul.f32 1.0, %v1491
  %v1493 = vsel %vm124, %v1486, %v1492
  %v1495 = vrot.slane %v1395, 6
  %v1497 = vmul.f32 %v1493, %v1495
  %1499 = vrot.lane.b32.xlu0 %v1493, 64
  %v1500 = vpop.permute.xlu0 %1499
  %v1502 = vmul.f32 %v1493, %v1500
  %1504 = vrot.lane.b32.xlu0 %v1502, 32
  %v1505 = vpop.permute.xlu0 %1504
  %v1507 = vadd.f32 %v1497, %v1505
  %v1508 = vtanh.pop %v1507
  %1510 = vrot.lane.b32.xlu0 %v1508, 64
  %v1511 = vpop.permute.xlu0 %1510
  %v1513 = vmul.f32 %v1493, %v1511
  %1515 = vrot.lane.b32.xlu0 %v1513, 32
  %v1516 = vpop.permute.xlu0 %1515
  %1518 = vst.msk [vmem:[#allocation2] sm:$0x30] %vm544, %v1516
  %v1519 = vrot.slane %v1513, 4
  %1520 = vrot.lane.b32.xlu0 %v1519, 32
  %v1521 = vpop.permute.xlu0 %1520
  %v1522 = vsel %vm40, %v1521, 0
  %1524 = vmatprep.subr.mxu0 0.0
  %1525 = vmatpush1.msra.mxu0 %v1107
  %1526 = vmatprep.subr.mxu0 0.0
  %1527 = vmatpush1.msra.mxu0 %v1108
  %1528 = vmatprep.subr.mxu0 0.0
  %1529 = vmatpush1.msra.mxu0 %v1109
  %1530 = vmatprep.subr.mxu0 0.0
  %1531 = vmatpush1.msra.mxu0 %v1110
  %1532 = vmatprep.subr.mxu0 0.0
  %1533 = vmatpush1.msra.mxu0 0.0
  %1534 = vmatprep.subr.mxu0 0.0
  %1535 = vmatpush1.msra.mxu0 0.0
  %1536 = vmatprep.subr.mxu0 0.0
  %1537 = vmatpush1.msra.mxu0 0.0
  %1538 = vmatprep.subr.mxu0 0.0
  %1539 = vmatpush1.msra.mxu0 0.0
  %1540 = vmatprep.subr.mxu0 0.0
  %1541 = vmatpush1.msra.mxu0 0.0
  %1542 = vmatprep.subr.mxu0 0.0
  %1543 = vmatpush1.msra.mxu0 0.0
  %1544 = vmatprep.subr.mxu0 0.0
  %1545 = vmatpush1.msra.mxu0 0.0
  %1546 = vmatprep.subr.mxu0 0.0
  %1547 = vmatpush1.msra.mxu0 0.0
  %1548 = vmatprep.subr.mxu0 0.0
  %1549 = vmatpush1.msra.mxu0 0.0
  %1550 = vmatprep.subr.mxu0 0.0
  %1551 = vmatpush1.msra.mxu0 0.0
  %1552 = vmatprep.subr.mxu0 0.0
  %1553 = vmatpush1.msra.mxu0 0.0
  %1554 = vmatprep.subr.mxu0 0.0
  %1555 = vmatpush1.msra.mxu0 0.0
  %1556 = vmatprep.subr.mxu0 0.0
  %1557 = vmatpush1.msra.mxu0 0.0
  %1558 = vmatprep.subr.mxu0 0.0
  %1559 = vmatpush1.msra.mxu0 0.0
  %1560 = vmatprep.subr.mxu0 0.0
  %1561 = vmatpush1.msra.mxu0 0.0
  %1562 = vmatprep.subr.mxu0 0.0
  %1563 = vmatpush1.msra.mxu0 0.0
  %1564 = vmatprep.subr.mxu0 0.0
  %1565 = vmatpush1.msra.mxu0 0.0
  %1566 = vmatprep.subr.mxu0 0.0
  %1567 = vmatpush1.msra.mxu0 0.0
  %1568 = vmatprep.subr.mxu0 0.0
  %1569 = vmatpush1.msra.mxu0 0.0
  %1570 = vmatprep.subr.mxu0 0.0
  %1571 = vmatpush1.msra.mxu0 0.0
  %1572 = vmatprep.subr.mxu0 0.0
  %1573 = vmatpush1.msra.mxu0 0.0
  %1574 = vmatprep.subr.mxu0 0.0
  %1575 = vmatpush1.msra.mxu0 0.0
  %1576 = vmatprep.subr.mxu0 0.0
  %1577 = vmatpush1.msra.mxu0 0.0
  %1578 = vmatprep.subr.mxu0 0.0
  %1579 = vmatpush1.msra.mxu0 0.0
  %1580 = vmatprep.subr.mxu0 0.0
  %1581 = vmatpush1.msra.mxu0 0.0
  %1582 = vmatprep.subr.mxu0 0.0
  %1583 = vmatpush1.msra.mxu0 0.0
  %1584 = vmatprep.subr.mxu0 0.0
  %1585 = vmatpush1.msra.mxu0 0.0
  %1586 = vmatprep.subr.mxu0 0.0
  %1587 = vmatpush1.msra.mxu0 0.0
  %1588 = vmatprep.mubr.f32.mxu0 0.0
  %1589 = vmatmul.mubr.f32.gmra.mrb[0].mxu0 %v1522
  %v1590 = vpop.f32.mrb[0].mxu0
  %v1591 = vadd.f32 0.0, %v1590
  %v1592 = vpop.f32.mrb[0].mxu0
  %1593 = vdwg.mxu0
  %v1595 = vrot.slane %v1591, 2
  %v1597 = vadd.f32 %v1189, %v1595
  %v1598 = vtanh.pop %v1597
  %v1599 = vxor.u32 %v1597, 2147483648
  %v1600 = vmul.f32 %v1599, 1.442695
  %v1601 = vpow.pop %v1600
  %v1602 = vadd.f32 %v1601, 1.0
  %v1603 = vrcp.pop %v1602
  %v1604 = vmul.f32 1.0, %v1603
  %v1605 = vsel %vm124, %v1598, %v1604
  %v1607 = vrot.slane %v1507, 6
  %v1609 = vmul.f32 %v1605, %v1607
  %1611 = vrot.lane.b32.xlu0 %v1605, 64
  %v1612 = vpop.permute.xlu0 %1611
  %v1614 = vmul.f32 %v1605, %v1612
  %1616 = vrot.lane.b32.xlu0 %v1614, 32
  %v1617 = vpop.permute.xlu0 %1616
  %v1619 = vadd.f32 %v1609, %v1617
  %v1620 = vtanh.pop %v1619
  %1622 = vrot.lane.b32.xlu0 %v1620, 64
  %v1623 = vpop.permute.xlu0 %1622
  %v1625 = vmul.f32 %v1605, %v1623
  %1627 = vrot.lane.b32.xlu0 %v1625, 32
  %v1628 = vpop.permute.xlu0 %1627
  %1630 = vst.msk [vmem:[#allocation2] sm:$0xc0] %vm657, %v1628
  %v1631 = vrot.slane %v1625, 6
  %1632 = vrot.lane.b32.xlu0 %v1631, 32
  %v1633 = vpop.permute.xlu0 %1632
  %v1634 = vsel %vm40, %v1633, 0
  %1636 = vmatprep.subr.mxu0 0.0
  %1637 = vmatpush1.msra.mxu0 %v1107
  %1638 = vmatprep.subr.mxu0 0.0
  %1639 = vmatpush1.msra.mxu0 %v1108
  %1640 = vmatprep.subr.mxu0 0.0
  %1641 = vmatpush1.msra.mxu0 %v1109
  %1642 = vmatprep.subr.mxu0 0.0
  %1643 = vmatpush1.msra.mxu0 %v1110
  %1644 = vmatprep.subr.mxu0 0.0
  %1645 = vmatpush1.msra.mxu0 0.0
  %1646 = vmatprep.subr.mxu0 0.0
  %1647 = vmatpush1.msra.mxu0 0.0
  %1648 = vmatprep.subr.mxu0 0.0
  %1649 = vmatpush1.msra.mxu0 0.0
  %1650 = vmatprep.subr.mxu0 0.0
  %1651 = vmatpush1.msra.mxu0 0.0
  %1652 = vmatprep.subr.mxu0 0.0
  %1653 = vmatpush1.msra.mxu0 0.0
  %1654 = vmatprep.subr.mxu0 0.0
  %1655 = vmatpush1.msra.mxu0 0.0
  %1656 = vmatprep.subr.mxu0 0.0
  %1657 = vmatpush1.msra.mxu0 0.0
  %1658 = vmatprep.subr.mxu0 0.0
  %1659 = vmatpush1.msra.mxu0 0.0
  %1660 = vmatprep.subr.mxu0 0.0
  %1661 = vmatpush1.msra.mxu0 0.0
  %1662 = vmatprep.subr.mxu0 0.0
  %1663 = vmatpush1.msra.mxu0 0.0
  %1664 = vmatprep.subr.mxu0 0.0
  %1665 = vmatpush1.msra.mxu0 0.0
  %1666 = vmatprep.subr.mxu0 0.0
  %1667 = vmatpush1.msra.mxu0 0.0
  %1668 = vmatprep.subr.mxu0 0.0
  %1669 = vmatpush1.msra.mxu0 0.0
  %1670 = vmatprep.subr.mxu0 0.0
  %1671 = vmatpush1.msra.mxu0 0.0
  %1672 = vmatprep.subr.mxu0 0.0
  %1673 = vmatpush1.msra.mxu0 0.0
  %1674 = vmatprep.subr.mxu0 0.0
  %1675 = vmatpush1.msra.mxu0 0.0
  %1676 = vmatprep.subr.mxu0 0.0
  %1677 = vmatpush1.msra.mxu0 0.0
  %1678 = vmatprep.subr.mxu0 0.0
  %1679 = vmatpush1.msra.mxu0 0.0
  %1680 = vmatprep.subr.mxu0 0.0
  %1681 = vmatpush1.msra.mxu0 0.0
  %1682 = vmatprep.subr.mxu0 0.0
  %1683 = vmatpush1.msra.mxu0 0.0
  %1684 = vmatprep.subr.mxu0 0.0
  %1685 = vmatpush1.msra.mxu0 0.0
  %1686 = vmatprep.subr.mxu0 0.0
  %1687 = vmatpush1.msra.mxu0 0.0
  %1688 = vmatprep.subr.mxu0 0.0
  %1689 = vmatpush1.msra.mxu0 0.0
  %1690 = vmatprep.subr.mxu0 0.0
  %1691 = vmatpush1.msra.mxu0 0.0
  %1692 = vmatprep.subr.mxu0 0.0
  %1693 = vmatpush1.msra.mxu0 0.0
  %1694 = vmatprep.subr.mxu0 0.0
  %1695 = vmatpush1.msra.mxu0 0.0
  %1696 = vmatprep.subr.mxu0 0.0
  %1697 = vmatpush1.msra.mxu0 0.0
  %1698 = vmatprep.subr.mxu0 0.0
  %1699 = vmatpush1.msra.mxu0 0.0
  %1700 = vmatprep.mubr.f32.mxu0 0.0
  %1701 = vmatmul.mubr.f32.gmra.mrb[0].mxu0 %v1634
  %v1702 = vpop.f32.mrb[0].mxu0
  %v1703 = vadd.f32 0.0, %v1702
  %v1704 = vpop.f32.mrb[0].mxu0
  %1705 = vdwg.mxu0
  %v1706 = vadd.f32 %v1194, %v1703
  %v1707 = vtanh.pop %v1706
  %v1708 = vxor.u32 %v1706, 2147483648
  %v1709 = vmul.f32 %v1708, 1.442695
  %v1710 = vpow.pop %v1709
  %v1711 = vadd.f32 %v1710, 1.0
  %v1712 = vrcp.pop %v1711
  %v1713 = vmul.f32 1.0, %v1712
  %v1714 = vsel %vm124, %v1707, %v1713
  %v1716 = vrot.slane %v1619, 6
  %v1718 = vmul.f32 %v1714, %v1716
  %1720 = vrot.lane.b32.xlu0 %v1714, 64
  %v1721 = vpop.permute.xlu0 %1720
  %v1723 = vmul.f32 %v1714, %v1721
  %1725 = vrot.lane.b32.xlu0 %v1723, 32
  %v1726 = vpop.permute.xlu0 %1725
  %v1728 = vadd.f32 %v1718, %v1726
  %v1729 = vtanh.pop %v1728
  %1731 = vrot.lane.b32.xlu0 %v1729, 64
  %v1732 = vpop.permute.xlu0 %1731
  %v1734 = vmul.f32 %v1714, %v1732
  %1736 = vrot.lane.b32.xlu0 %v1734, 32
  %v1737 = vpop.permute.xlu0 %1736
  %1739 = vst.msk [vmem:[#allocation2 + $0x8] sm:$0x3] %vm321, %v1737
  %v1740 = vsel %vm40, %v1737, 0
  %1742 = vmatprep.subr.mxu0 0.0
  %1743 = vmatpush1.msra.mxu0 %v1107
  %1744 = vmatprep.subr.mxu0 0.0
  %1745 = vmatpush1.msra.mxu0 %v1108
  %1746 = vmatprep.subr.mxu0 0.0
  %1747 = vmatpush1.msra.mxu0 %v1109
  %1748 = vmatprep.subr.mxu0 0.0
  %1749 = vmatpush1.msra.mxu0 %v1110
  %1750 = vmatprep.subr.mxu0 0.0
  %1751 = vmatpush1.msra.mxu0 0.0
  %1752 = vmatprep.subr.mxu0 0.0
  %1753 = vmatpush1.msra.mxu0 0.0
  %1754 = vmatprep.subr.mxu0 0.0
  %1755 = vmatpush1.msra.mxu0 0.0
  %1756 = vmatprep.subr.mxu0 0.0
  %1757 = vmatpush1.msra.mxu0 0.0
  %1758 = vmatprep.subr.mxu0 0.0
  %1759 = vmatpush1.msra.mxu0 0.0
  %1760 = vmatprep.subr.mxu0 0.0
  %1761 = vmatpush1.msra.mxu0 0.0
  %1762 = vmatprep.subr.mxu0 0.0
  %1763 = vmatpush1.msra.mxu0 0.0
  %1764 = vmatprep.subr.mxu0 0.0
  %1765 = vmatpush1.msra.mxu0 0.0
  %1766 = vmatprep.subr.mxu0 0.0
  %1767 = vmatpush1.msra.mxu0 0.0
  %1768 = vmatprep.subr.mxu0 0.0
  %1769 = vmatpush1.msra.mxu0 0.0
  %1770 = vmatprep.subr.mxu0 0.0
  %1771 = vmatpush1.msra.mxu0 0.0
  %1772 = vmatprep.subr.mxu0 0.0
  %1773 = vmatpush1.msra.mxu0 0.0
  %1774 = vmatprep.subr.mxu0 0.0
  %1775 = vmatpush1.msra.mxu0 0.0
  %1776 = vmatprep.subr.mxu0 0.0
  %1777 = vmatpush1.msra.mxu0 0.0
  %1778 = vmatprep.subr.mxu0 0.0
  %1779 = vmatpush1.msra.mxu0 0.0
  %1780 = vmatprep.subr.mxu0 0.0
  %1781 = vmatpush1.msra.mxu0 0.0
  %1782 = vmatprep.subr.mxu0 0.0
  %1783 = vmatpush1.msra.mxu0 0.0
  %1784 = vmatprep.subr.mxu0 0.0
  %1785 = vmatpush1.msra.mxu0 0.0
  %1786 = vmatprep.subr.mxu0 0.0
  %1787 = vmatpush1.msra.mxu0 0.0
  %1788 = vmatprep.subr.mxu0 0.0
  %1789 = vmatpush1.msra.mxu0 0.0
  %1790 = vmatprep.subr.mxu0 0.0
  %1791 = vmatpush1.msra.mxu0 0.0
  %1792 = vmatprep.subr.mxu0 0.0
  %1793 = vmatpush1.msra.mxu0 0.0
  %1794 = vmatprep.subr.mxu0 0.0
  %1795 = vmatpush1.msra.mxu0 0.0
  %1796 = vmatprep.subr.mxu0 0.0
  %1797 = vmatpush1.msra.mxu0 0.0
  %1798 = vmatprep.subr.mxu0 0.0
  %1799 = vmatpush1.msra.mxu0 0.0
  %1800 = vmatprep.subr.mxu0 0.0
  %1801 = vmatpush1.msra.mxu0 0.0
  %1802 = vmatprep.subr.mxu0 0.0
  %1803 = vmatpush1.msra.mxu0 0.0
  %1804 = vmatprep.subr.mxu0 0.0
  %1805 = vmatpush1.msra.mxu0 0.0
  %1806 = vmatprep.mubr.f32.mxu0 0.0
  %1807 = vmatmul.mubr.f32.gmra.mrb[0].mxu0 %v1740
  %v1808 = vpop.f32.mrb[0].mxu0
  %v1809 = vadd.f32 0.0, %v1808
  %v1810 = vpop.f32.mrb[0].mxu0
  %1811 = vdwg.mxu0
  %v1813 = vrot.slane %v1809, 6
  %v1815 = vadd.f32 %v1194, %v1813
  %v1816 = vtanh.pop %v1815
  %v1817 = vxor.u32 %v1815, 2147483648
  %v1818 = vmul.f32 %v1817, 1.442695
  %v1819 = vpow.pop %v1818
  %v1820 = vadd.f32 %v1819, 1.0
  %v1821 = vrcp.pop %v1820
  %v1822 = vmul.f32 1.0, %v1821
  %v1823 = vsel %vm124, %v1816, %v1822
  %v1825 = vrot.slane %v1728, 6
  %v1827 = vmul.f32 %v1823, %v1825
  %1829 = vrot.lane.b32.xlu0 %v1823, 64
  %v1830 = vpop.permute.xlu0 %1829
  %v1832 = vmul.f32 %v1823, %v1830
  %1834 = vrot.lane.b32.xlu0 %v1832, 32
  %v1835 = vpop.permute.xlu0 %1834
  %v1837 = vadd.f32 %v1827, %v1835
  %v1838 = vtanh.pop %v1837
  %1840 = vrot.lane.b32.xlu0 %v1838, 64
  %v1841 = vpop.permute.xlu0 %1840
  %v1843 = vmul.f32 %v1823, %v1841
  %1845 = vrot.lane.b32.xlu0 %v1843, 32
  %v1846 = vpop.permute.xlu0 %1845
  %1848 = vst.msk [vmem:[#allocation2 + $0x8] sm:$0xc] %vm431, %v1846
  %v1849 = vrot.slane %v1843, 2
  %1850 = vrot.lane.b32.xlu0 %v1849, 32
  %v1851 = vpop.permute.xlu0 %1850
  %v1852 = vsel %vm40, %v1851, 0
  %1854 = vmatprep.subr.mxu0 0.0
  %1855 = vmatpush1.msra.mxu0 %v1107
  %1856 = vmatprep.subr.mxu0 0.0
  %1857 = vmatpush1.msra.mxu0 %v1108
  %1858 = vmatprep.subr.mxu0 0.0
  %1859 = vmatpush1.msra.mxu0 %v1109
  %1860 = vmatprep.subr.mxu0 0.0
  %1861 = vmatpush1.msra.mxu0 %v1110
  %1862 = vmatprep.subr.mxu0 0.0
  %1863 = vmatpush1.msra.mxu0 0.0
  %1864 = vmatprep.subr.mxu0 0.0
  %1865 = vmatpush1.msra.mxu0 0.0
  %1866 = vmatprep.subr.mxu0 0.0
  %1867 = vmatpush1.msra.mxu0 0.0
  %1868 = vmatprep.subr.mxu0 0.0
  %1869 = vmatpush1.msra.mxu0 0.0
  %1870 = vmatprep.subr.mxu0 0.0
  %1871 = vmatpush1.msra.mxu0 0.0
  %1872 = vmatprep.subr.mxu0 0.0
  %1873 = vmatpush1.msra.mxu0 0.0
  %1874 = vmatprep.subr.mxu0 0.0
  %1875 = vmatpush1.msra.mxu0 0.0
  %1876 = vmatprep.subr.mxu0 0.0
  %1877 = vmatpush1.msra.mxu0 0.0
  %1878 = vmatprep.subr.mxu0 0.0
  %1879 = vmatpush1.msra.mxu0 0.0
  %1880 = vmatprep.subr.mxu0 0.0
  %1881 = vmatpush1.msra.mxu0 0.0
  %1882 = vmatprep.subr.mxu0 0.0
  %1883 = vmatpush1.msra.mxu0 0.0
  %1884 = vmatprep.subr.mxu0 0.0
  %1885 = vmatpush1.msra.mxu0 0.0
  %1886 = vmatprep.subr.mxu0 0.0
  %1887 = vmatpush1.msra.mxu0 0.0
  %1888 = vmatprep.subr.mxu0 0.0
  %1889 = vmatpush1.msra.mxu0 0.0
  %1890 = vmatprep.subr.mxu0 0.0
  %1891 = vmatpush1.msra.mxu0 0.0
  %1892 = vmatprep.subr.mxu0 0.0
  %1893 = vmatpush1.msra.mxu0 0.0
  %1894 = vmatprep.subr.mxu0 0.0
  %1895 = vmatpush1.msra.mxu0 0.0
  %1896 = vmatprep.subr.mxu0 0.0
  %1897 = vmatpush1.msra.mxu0 0.0
  %1898 = vmatprep.subr.mxu0 0.0
  %1899 = vmatpush1.msra.mxu0 0.0
  %1900 = vmatprep.subr.mxu0 0.0
  %1901 = vmatpush1.msra.mxu0 0.0
  %1902 = vmatprep.subr.mxu0 0.0
  %1903 = vmatpush1.msra.mxu0 0.0
  %1904 = vmatprep.subr.mxu0 0.0
  %1905 = vmatpush1.msra.mxu0 0.0
  %1906 = vmatprep.subr.mxu0 0.0
  %1907 = vmatpush1.msra.mxu0 0.0
  %1908 = vmatprep.subr.mxu0 0.0
  %1909 = vmatpush1.msra.mxu0 0.0
  %1910 = vmatprep.subr.mxu0 0.0
  %1911 = vmatpush1.msra.mxu0 0.0
  %1912 = vmatprep.subr.mxu0 0.0
  %1913 = vmatpush1.msra.mxu0 0.0
  %1914 = vmatprep.subr.mxu0 0.0
  %1915 = vmatpush1.msra.mxu0 0.0
  %1916 = vmatprep.subr.mxu0 0.0
  %1917 = vmatpush1.msra.mxu0 0.0
  %1918 = vmatprep.mubr.f32.mxu0 0.0
  %1919 = vmatmul.mubr.f32.gmra.mrb[0].mxu0 %v1852
  %v1920 = vpop.f32.mrb[0].mxu0
  %v1921 = vadd.f32 0.0, %v1920
  %v1922 = vpop.f32.mrb[0].mxu0
  %1923 = vdwg.mxu0
  %v1925 = vrot.slane %v1921, 4
  %v1927 = vadd.f32 %v1194, %v1925
  %v1928 = vtanh.pop %v1927
  %v1929 = vxor.u32 %v1927, 2147483648
  %v1930 = vmul.f32 %v1929, 1.442695
  %v1931 = vpow.pop %v1930
  %v1932 = vadd.f32 %v1931, 1.0
  %v1933 = vrcp.pop %v1932
  %v1934 = vmul.f32 1.0, %v1933
  %v1935 = vsel %vm124, %v1928, %v1934
  %v1937 = vrot.slane %v1837, 6
  %v1939 = vmul.f32 %v1935, %v1937
  %1941 = vrot.lane.b32.xlu0 %v1935, 64
  %v1942 = vpop.permute.xlu0 %1941
  %v1944 = vmul.f32 %v1935, %v1942
  %1946 = vrot.lane.b32.xlu0 %v1944, 32
  %v1947 = vpop.permute.xlu0 %1946
  %v1949 = vadd.f32 %v1939, %v1947
  %v1950 = vtanh.pop %v1949
  %1952 = vrot.lane.b32.xlu0 %v1950, 64
  %v1953 = vpop.permute.xlu0 %1952
  %v1955 = vmul.f32 %v1935, %v1953
  %1957 = vrot.lane.b32.xlu0 %v1955, 32
  %v1958 = vpop.permute.xlu0 %1957
  %1960 = vst.msk [vmem:[#allocation2 + $0x8] sm:$0x30] %vm544, %v1958
  %v1961 = vrot.slane %v1955, 4
  %1962 = vrot.lane.b32.xlu0 %v1961, 32
  %v1963 = vpop.permute.xlu0 %1962
  %v1964 = vsel %vm40, %v1963, 0
  %1966 = vmatprep.subr.mxu0 0.0
  %1967 = vmatpush1.msra.mxu0 %v1107
  %1968 = vmatprep.subr.mxu0 0.0
  %1969 = vmatpush1.msra.mxu0 %v1108
  %1970 = vmatprep.subr.mxu0 0.0
  %1971 = vmatpush1.msra.mxu0 %v1109
  %1972 = vmatprep.subr.mxu0 0.0
  %1973 = vmatpush1.msra.mxu0 %v1110
  %1974 = vmatprep.subr.mxu0 0.0
  %1975 = vmatpush1.msra.mxu0 0.0
  %1976 = vmatprep.subr.mxu0 0.0
  %1977 = vmatpush1.msra.mxu0 0.0
  %1978 = vmatprep.subr.mxu0 0.0
  %1979 = vmatpush1.msra.mxu0 0.0
  %1980 = vmatprep.subr.mxu0 0.0
  %1981 = vmatpush1.msra.mxu0 0.0
  %1982 = vmatprep.subr.mxu0 0.0
  %1983 = vmatpush1.msra.mxu0 0.0
  %1984 = vmatprep.subr.mxu0 0.0
  %1985 = vmatpush1.msra.mxu0 0.0
  %1986 = vmatprep.subr.mxu0 0.0
  %1987 = vmatpush1.msra.mxu0 0.0
  %1988 = vmatprep.subr.mxu0 0.0
  %1989 = vmatpush1.msra.mxu0 0.0
  %1990 = vmatprep.subr.mxu0 0.0
  %1991 = vmatpush1.msra.mxu0 0.0
  %1992 = vmatprep.subr.mxu0 0.0
  %1993 = vmatpush1.msra.mxu0 0.0
  %1994 = vmatprep.subr.mxu0 0.0
  %1995 = vmatpush1.msra.mxu0 0.0
  %1996 = vmatprep.subr.mxu0 0.0
  %1997 = vmatpush1.msra.mxu0 0.0
  %1998 = vmatprep.subr.mxu0 0.0
  %1999 = vmatpush1.msra.mxu0 0.0
  %2000 = vmatprep.subr.mxu0 0.0
  %2001 = vmatpush1.msra.mxu0 0.0
  %2002 = vmatprep.subr.mxu0 0.0
  %2003 = vmatpush1.msra.mxu0 0.0
  %2004 = vmatprep.subr.mxu0 0.0
  %2005 = vmatpush1.msra.mxu0 0.0
  %2006 = vmatprep.subr.mxu0 0.0
  %2007 = vmatpush1.msra.mxu0 0.0
  %2008 = vmatprep.subr.mxu0 0.0
  %2009 = vmatpush1.msra.mxu0 0.0
  %2010 = vmatprep.subr.mxu0 0.0
  %2011 = vmatpush1.msra.mxu0 0.0
  %2012 = vmatprep.subr.mxu0 0.0
  %2013 = vmatpush1.msra.mxu0 0.0
  %2014 = vmatprep.subr.mxu0 0.0
  %2015 = vmatpush1.msra.mxu0 0.0
  %2016 = vmatprep.subr.mxu0 0.0
  %2017 = vmatpush1.msra.mxu0 0.0
  %2018 = vmatprep.subr.mxu0 0.0
  %2019 = vmatpush1.msra.mxu0 0.0
  %2020 = vmatprep.subr.mxu0 0.0
  %2021 = vmatpush1.msra.mxu0 0.0
  %2022 = vmatprep.subr.mxu0 0.0
  %2023 = vmatpush1.msra.mxu0 0.0
  %2024 = vmatprep.subr.mxu0 0.0
  %2025 = vmatpush1.msra.mxu0 0.0
  %2026 = vmatprep.subr.mxu0 0.0
  %2027 = vmatpush1.msra.mxu0 0.0
  %2028 = vmatprep.subr.mxu0 0.0
  %2029 = vmatpush1.msra.mxu0 0.0
  %2030 = vmatprep.mubr.f32.mxu0 0.0
  %2031 = vmatmul.mubr.f32.gmra.mrb[0].mxu0 %v1964
  %v2032 = vpop.f32.mrb[0].mxu0
  %v2033 = vadd.f32 0.0, %v2032
  %v2034 = vpop.f32.mrb[0].mxu0
  %2035 = vdwg.mxu0
  %v2037 = vrot.slane %v2033, 2
  %v2039 = vadd.f32 %v1194, %v2037
  %v2040 = vtanh.pop %v2039
  %v2041 = vxor.u32 %v2039, 2147483648
  %v2042 = vmul.f32 %v2041, 1.442695
  %v2043 = vpow.pop %v2042
  %v2044 = vadd.f32 %v2043, 1.0
  %v2045 = vrcp.pop %v2044
  %v2046 = vmul.f32 1.0, %v2045
  %v2047 = vsel %vm124, %v2040, %v2046
  %v2049 = vrot.slane %v1949, 6
  %v2051 = vmul.f32 %v2047, %v2049
  %2053 = vrot.lane.b32.xlu0 %v2047, 64
  %v2054 = vpop.permute.xlu0 %2053
  %v2056 = vmul.f32 %v2047, %v2054
  %2058 = vrot.lane.b32.xlu0 %v2056, 32
  %v2059 = vpop.permute.xlu0 %2058
  %v2061 = vadd.f32 %v2051, %v2059
  %v2062 = vtanh.pop %v2061
  %2064 = vrot.lane.b32.xlu0 %v2062, 64
  %v2065 = vpop.permute.xlu0 %2064
  %v2067 = vmul.f32 %v2047, %v2065
  %2069 = vrot.lane.b32.xlu0 %v2067, 32
  %v2070 = vpop.permute.xlu0 %2069
  %2072 = vst.msk [vmem:[#allocation2 + $0x8] sm:$0xc0] %vm657, %v2070
  %v2073 = vld [vmem:[#allocation2] sm:$0xff]
  %v2074 = vld [vmem:[#allocation2 + $0x8] sm:$0xff]
  %v2075 = vld [vmem:[%s4] sm:$0xff]
  %v2076 = vld [vmem:[%s4 + $0x8] sm:$0xff]
  %v2077 = vld [vmem:[%s4 + $0x10] sm:$0xff]
  %v2078 = vld [vmem:[%s4 + $0x18] sm:$0xff]
  %v2079 = vld [vmem:[%s4 + $0x20] sm:$0x1]
  %v2080 = vlaneseq
  %v2081 = vshrl.u32 %v2080, 7
  %v2082 = vsub.s32 0, %v2081
  %v2083 = vrot.slane %v2079, %v2082
  %v2085 = vsel %vm40, %v2073, 0
  %v2088 = vsel %vm40, %v2074, 0
  %2090 = vmatprep.subr.mxu0 0.0
  %2091 = vmatpush1.msra.mxu0 %v2075
  %2092 = vmatprep.subr.mxu0 0.0
  %2093 = vmatpush1.msra.mxu0 %v2076
  %2094 = vmatprep.subr.mxu0 0.0
  %2095 = vmatpush1.msra.mxu0 %v2077
  %2096 = vmatprep.subr.mxu0 0.0
  %2097 = vmatpush1.msra.mxu0 %v2078
  %2098 = vmatprep.subr.mxu0 0.0
  %2099 = vmatpush1.msra.mxu0 0.0
  %2100 = vmatprep.subr.mxu0 0.0
  %2101 = vmatpush1.msra.mxu0 0.0
  %2102 = vmatprep.subr.mxu0 0.0
  %2103 = vmatpush1.msra.mxu0 0.0
  %2104 = vmatprep.subr.mxu0 0.0
  %2105 = vmatpush1.msra.mxu0 0.0
  %2106 = vmatprep.subr.mxu0 0.0
  %2107 = vmatpush1.msra.mxu0 0.0
  %2108 = vmatprep.subr.mxu0 0.0
  %2109 = vmatpush1.msra.mxu0 0.0
  %2110 = vmatprep.subr.mxu0 0.0
  %2111 = vmatpush1.msra.mxu0 0.0
  %2112 = vmatprep.subr.mxu0 0.0
  %2113 = vmatpush1.msra.mxu0 0.0
  %2114 = vmatprep.subr.mxu0 0.0
  %2115 = vmatpush1.msra.mxu0 0.0
  %2116 = vmatprep.subr.mxu0 0.0
  %2117 = vmatpush1.msra.mxu0 0.0
  %2118 = vmatprep.subr.mxu0 0.0
  %2119 = vmatpush1.msra.mxu0 0.0
  %2120 = vmatprep.subr.mxu0 0.0
  %2121 = vmatpush1.msra.mxu0 0.0
  %2122 = vmatprep.subr.mxu0 0.0
  %2123 = vmatpush1.msra.mxu0 0.0
  %2124 = vmatprep.subr.mxu0 0.0
  %2125 = vmatpush1.msra.mxu0 0.0
  %2126 = vmatprep.subr.mxu0 0.0
  %2127 = vmatpush1.msra.mxu0 0.0
  %2128 = vmatprep.subr.mxu0 0.0
  %2129 = vmatpush1.msra.mxu0 0.0
  %2130 = vmatprep.subr.mxu0 0.0
  %2131 = vmatpush1.msra.mxu0 0.0
  %2132 = vmatprep.subr.mxu0 0.0
  %2133 = vmatpush1.msra.mxu0 0.0
  %2134 = vmatprep.subr.mxu0 0.0
  %2135 = vmatpush1.msra.mxu0 0.0
  %2136 = vmatprep.subr.mxu0 0.0
  %2137 = vmatpush1.msra.mxu0 0.0
  %2138 = vmatprep.subr.mxu0 0.0
  %2139 = vmatpush1.msra.mxu0 0.0
  %2140 = vmatprep.subr.mxu0 0.0
  %2141 = vmatpush1.msra.mxu0 0.0
  %2142 = vmatprep.subr.mxu0 0.0
  %2143 = vmatpush1.msra.mxu0 0.0
  %2144 = vmatprep.subr.mxu0 0.0
  %2145 = vmatpush1.msra.mxu0 0.0
  %2146 = vmatprep.subr.mxu0 0.0
  %2147 = vmatpush1.msra.mxu0 0.0
  %2148 = vmatprep.subr.mxu0 0.0
  %2149 = vmatpush1.msra.mxu0 0.0
  %2150 = vmatprep.subr.mxu0 0.0
  %2151 = vmatpush1.msra.mxu0 0.0
  %2152 = vmatprep.subr.mxu0 0.0
  %2153 = vmatpush1.msra.mxu0 0.0
  %2154 = vmatprep.mubr.f32.mxu0 0.0
  %2155 = vmatmul.mubr.f32.gmra.mrb[0].mxu0 %v2085
  %v2156 = vpop.f32.mrb[0].mxu0
  %v2157 = vadd.f32 %v2083, %v2156
  %v2158 = vpop.f32.mrb[0].mxu0
  %2159 = vmatprep.mubr.f32.mxu0 0.0
  %2160 = vmatmul.mubr.f32.gmra.mrb[0].mxu0 %v2088
  %v2161 = vpop.f32.mrb[0].mxu0
  %v2162 = vadd.f32 %v2083, %v2161
  %v2163 = vpop.f32.mrb[0].mxu0
  %2164 = vdwg.mxu0
  %2165 = vst.msk [vmem:[%s5] sm:$0xff] %vm40, %v2157
  %2166 = vst.msk [vmem:[%s5 + $0x8] sm:$0xff] %vm40, %v2162
  // Predicated region
  $region22: #{simple_model_forward.1} parent=0 // pred_check
    _
  $region23: #{simple_model_forward.1} parent=0 // pred_check_branch
    %2168 = sbr.rel (0) target = $region25
  $region24: #{simple_model_forward.1} parent=0 // pred_region
    _
  $region25: #{simple_model_forward.1} parent=0 // pred_fallthru
    _
  // Predicated region
  $region26: #{simple_model_forward.1} parent=0 // pred_check
    _
  $region27: #{simple_model_forward.1} parent=0 // pred_check_branch
    %2170 = sbr.rel (0) target = $region29
  $region28: #{simple_model_forward.1} parent=0 // pred_region
    _
  $region29: #{simple_model_forward.1} parent=0 // pred_fallthru
    _

</llo_original>
